<compile_context>
chip_gen: v7x
topology: tpu7x:2x2x1
jax: 0.10.0
libtpu: 0.0.40
codegen_flags: <defaults>
</compile_context>

<pallas_src>
import functools

import jax
import jax.numpy as jnp
from jax import lax
from jax.experimental import pallas as pl
from jax.experimental.pallas import tpu as pltpu

EPS = 1e-5
NEG_SLOPE = 0.2


def _round_up(v, m):
  return (v + m - 1) // m * m


def _stage(x_in, w_m, xpad_ref, slab_ref, nfc, nlc, *,
           C, C_pad, W, HW, PAD, mxu_dtype):
  """conv3x3(pad=1) -> InstanceNorm2d -> LeakyReLU(0.2) for one sample.

  x_in    : (C, HW) value (channels on sublanes, flattened H*W on lanes).
  w_m     : (Cout, 9*C_pad) mxu-dtype value; K ordered (tap, ci), tap=dy*3+dx.
  xpad_ref: (C_pad, HW + 2*PAD) mxu-dtype VMEM scratch; lane borders and the
            channel-padding rows hold zeros (zeroed by the caller).
  slab_ref: (9*C_pad, HW) mxu-dtype VMEM scratch (im2col matrix); fully
            rewritten here, so it needs no zero init.
  nfc/nlc : (1, HW) bool lane masks: x-coordinate > 0 / < W-1.
  Returns (Cout, HW) float32.
  """
  # Stage the sample into the zero-bordered buffer; single cast to mxu dtype.
  xpad_ref[0:C, PAD:PAD + HW] = x_in.astype(mxu_dtype)

  # Build the im2col slab from 9 lane-shifted taps (ref slices, no full-slab
  # value materialization).  Vertical out-of-range taps land in the zero
  # borders automatically; the row wrap-around of the horizontal +-1 taps is
  # fixed with a column mask.
  for dy in range(3):
    for dx in range(3):
      t = dy * 3 + dx
      shift = (dy - 1) * W + (dx - 1)
      tap = xpad_ref[:, PAD + shift:PAD + shift + HW]      # (C_pad, HW)
      if dx == 0:
        tap = jnp.where(nfc, tap, jnp.zeros_like(tap))
      elif dx == 2:
        tap = jnp.where(nlc, tap, jnp.zeros_like(tap))
      slab_ref[t * C_pad:(t + 1) * C_pad, :] = tap

  # Single im2col matmul on the MXU, f32 accumulation.
  acc = jnp.dot(w_m, slab_ref[...], preferred_element_type=jnp.float32)

  # InstanceNorm2d(affine=False, eps=1e-5): biased variance per (n, channel).
  mean = jnp.mean(acc, axis=1, keepdims=True)              # (Cout, 1)
  cen = acc - mean
  var = jnp.mean(cen * cen, axis=1, keepdims=True)
  y = cen * lax.rsqrt(var + EPS)
  # LeakyReLU(negative_slope=0.2).
  return jnp.where(y >= 0, y, NEG_SLOPE * y)


def _conv_block_kernel(x_ref, w1_ref, w2_ref, col_ref, o_ref,
                       xp1_ref, xp2_ref, slab1_ref, slab2_ref, *,
                       W, HW, PAD, Cin, Cout, C1_pad, C2_pad, Nb, mxu_dtype):
  """Fused ConvBlock for `Nb` batch samples per grid step."""
  # Zero only what staging never writes: the two PAD-wide lane borders and the
  # channel-padding rows of the staging buffers.
  for c, c_pad, ref in ((Cin, C1_pad, xp1_ref), (Cout, C2_pad, xp2_ref)):
    ref[:, 0:PAD] = jnp.zeros((c_pad, PAD), ref.dtype)
    ref[:, PAD + HW:PAD + HW + PAD] = jnp.zeros((c_pad, PAD), ref.dtype)
    if c_pad != c:
      ref[c:c_pad, PAD:PAD + HW] = jnp.zeros((c_pad - c, HW), ref.dtype)

  col = col_ref[...]                   # (1, HW) int32: x coordinate per lane
  nfc = col > 0                        # valid for x-shift -1
  nlc = col < (W - 1)                  # valid for x-shift +1
  w1 = w1_ref[...]
  w2 = w2_ref[...]

  for n in range(Nb):                  # samples folded into this grid step
    x = x_ref[n]                       # (Cin, HW)
    y1 = _stage(x, w1, xp1_ref, slab1_ref, nfc, nlc, C=Cin, C_pad=C1_pad,
                W=W, HW=HW, PAD=PAD, mxu_dtype=mxu_dtype)
    # Dropout2d(p=0.0) is the identity (also identity in eval mode).
    y2 = _stage(y1, w2, xp2_ref, slab2_ref, nfc, nlc, C=Cout, C_pad=C2_pad,
                W=W, HW=HW, PAD=PAD, mxu_dtype=mxu_dtype)
    o_ref[n] = y2.astype(o_ref.dtype)  # lane-dense (Cout, HW) store


def _weight_slab(w_oihw, c_pad, mxu_dtype):
  """OIHW -> matmul-ready (Cout, 9*c_pad) slab, K ordered (tap, ci)."""
  cout, cin = w_oihw.shape[0], w_oihw.shape[1]
  w = jnp.transpose(w_oihw, (0, 2, 3, 1))                  # (Cout, 3, 3, Cin)
  if c_pad != cin:
    w = jnp.pad(w, ((0, 0), (0, 0), (0, 0), (0, c_pad - cin)))
  return w.reshape(cout, 9 * c_pad).astype(mxu_dtype)


@functools.partial(jax.jit, static_argnames=("mxu_dtype", "samples_per_step"))
def conv_block_forward(x_nchw, w1_oihw, w2_oihw, *, mxu_dtype=jnp.float32,
                       samples_per_step=None):
  """ConvBlock.forward. x: NCHW; weights: OIHW (PyTorch layout)."""
  N, Cin, H, W = x_nchw.shape
  Cout = w1_oihw.shape[0]
  HW = H * W

  # Samples folded into one grid step (amortizes per-step overhead).  On v7x
  # prefer keeping grid = N // Nb a multiple of 2 (two TensorCores with
  # dimension_semantics="parallel"); on v5e/v6e (one TC) fold as much as VMEM
  # allows.
  if samples_per_step is None:
    samples_per_step = 2 if N % 2 == 0 else 1
  Nb = max(d for d in range(1, min(samples_per_step, N) + 1) if N % d == 0)

  # Channel padding keeps every im2col slab store on whole (packed) sublane
  # tiles: multiples of 8 rows for f32 operands, 16 for bf16.
  sub = 8 * (4 // jnp.dtype(mxu_dtype).itemsize)
  C1_pad = _round_up(Cin, sub)
  C2_pad = _round_up(Cout, sub)
  # Lane padding for the shifted-tap windows; scales with W so the +-(W+1)
  # shifts can never index before the buffer start (works for W >= 128 too).
  PAD = _round_up(W + 1, 128)

  x2d = x_nchw.reshape(N, Cin, HW)                          # free reshape
  w1m = _weight_slab(w1_oihw, C1_pad, mxu_dtype)            # (Cout, 9*C1_pad)
  w2m = _weight_slab(w2_oihw, C2_pad, mxu_dtype)            # (Cout, 9*C2_pad)
  # x-coordinate of every flattened spatial position (host-side so the kernel
  # needs no vector integer div/mod).  Best perf when HW % 128 == 0.
  col_idx = jnp.tile(jnp.arange(W, dtype=jnp.int32), H).reshape(1, HW)

  kernel = functools.partial(
      _conv_block_kernel, W=W, HW=HW, PAD=PAD, Cin=Cin, Cout=Cout,
      C1_pad=C1_pad, C2_pad=C2_pad, Nb=Nb, mxu_dtype=mxu_dtype)

  out = pl.pallas_call(
      kernel,
      out_shape=jax.ShapeDtypeStruct((N, Cout, HW), x_nchw.dtype),
      grid_spec=pltpu.PrefetchScalarGridSpec(
          num_scalar_prefetch=0,
          grid=(N // Nb,),
          in_specs=[
              pl.BlockSpec((Nb, Cin, HW), lambda b: (b, 0, 0)),
              pl.BlockSpec((Cout, 9 * C1_pad), lambda b: (0, 0)),
              pl.BlockSpec((Cout, 9 * C2_pad), lambda b: (0, 0)),
              pl.BlockSpec((1, HW), lambda b: (0, 0)),
          ],
          out_specs=pl.BlockSpec((Nb, Cout, HW), lambda b: (b, 0, 0)),
          scratch_shapes=[
              pltpu.VMEM((C1_pad, HW + 2 * PAD), mxu_dtype),   # xp1
              pltpu.VMEM((C2_pad, HW + 2 * PAD), mxu_dtype),   # xp2
              pltpu.VMEM((9 * C1_pad, HW), mxu_dtype),         # slab1 (im2col)
              pltpu.VMEM((9 * C2_pad, HW), mxu_dtype),         # slab2 (im2col)
          ],
      ),
      compiler_params=pltpu.CompilerParams(
          dimension_semantics=("parallel",)),
  )(x2d, w1m, w2m, col_idx)
  return out.reshape(N, Cout, H, W)


def _reference_forward(x_nchw, w1_oihw, w2_oihw):
  """Pure-JAX reference (correctness check)."""
  def stage(x, w):
    y = lax.conv_general_dilated(
        x, w, window_strides=(1, 1), padding=((1, 1), (1, 1)),
        dimension_numbers=("NCHW", "OIHW", "NCHW"))
    mean = jnp.mean(y, axis=(2, 3), keepdims=True)
    var = jnp.mean((y - mean) ** 2, axis=(2, 3), keepdims=True)
    y = (y - mean) * lax.rsqrt(var + EPS)
    return jnp.where(y >= 0, y, NEG_SLOPE * y)
  return stage(stage(x_nchw, w1_oihw), w2_oihw)


if __name__ == "__main__":
  # Small shapes consistent with the module: N=2, in_chans=4, out_chans=8, 16x16.
  N, CIN, COUT, H, W = 2, 4, 8, 16, 16

  key = jax.random.PRNGKey(0)
  kx, k1, k2 = jax.random.split(key, 3)
  x = jax.random.normal(kx, (N, CIN, H, W), dtype=jnp.float32)
  w1 = 0.1 * jax.random.normal(k1, (COUT, CIN, 3, 3), dtype=jnp.float32)
  w2 = 0.1 * jax.random.normal(k2, (COUT, COUT, 3, 3), dtype=jnp.float32)

  ref = _reference_forward(x, w1, w2)

  # Default: f32 MXU operands, 2 samples folded per grid step.
  out = jax.block_until_ready(conv_block_forward(x, w1, w2))
  assert out.shape == (N, COUT, H, W), out.shape
  assert jnp.allclose(out, ref, atol=1e-4, rtol=1e-4), (
      float(jnp.max(jnp.abs(out - ref))))

  # One sample per grid step (keeps the grid a multiple of 2 for v7x megacore).
  out1 = jax.block_until_ready(
      conv_block_forward(x, w1, w2, samples_per_step=1))
  assert jnp.allclose(out1, ref, atol=1e-4, rtol=1e-4), (
      float(jnp.max(jnp.abs(out1 - ref))))

  # bf16 MXU operands (fine on v5e/v6e/v7x): f32 accumulation + f32
  # InstanceNorm/LeakyReLU math, so only the conv operands are rounded.
  out_bf16 = jax.block_until_ready(
      conv_block_forward(x, w1, w2, mxu_dtype=jnp.bfloat16))
  assert out_bf16.shape == (N, COUT, H, W)
  assert float(jnp.max(jnp.abs(out_bf16 - ref))) < 0.25

  print("KERNEL_OK")
</pallas_src>

<mosaic_0001>
module attributes {stable_mosaic.version = 11 : i64} {
  func.func @_conv_block_kernel(%arg0: i32, %arg1: memref<2x4x256xf32, #tpu.memory_space<vmem>>, %arg2: memref<8x72xf32, #tpu.memory_space<vmem>>, %arg3: memref<8x72xf32, #tpu.memory_space<vmem>>, %arg4: memref<1x256xi32, #tpu.memory_space<vmem>>, %arg5: memref<2x8x256xf32, #tpu.memory_space<vmem>>, %arg6: memref<8x512xf32, #tpu.memory_space<vmem>>, %arg7: memref<8x512xf32, #tpu.memory_space<vmem>>, %arg8: memref<72x256xf32, #tpu.memory_space<vmem>>, %arg9: memref<72x256xf32, #tpu.memory_space<vmem>>) attributes {dimension_semantics = [#tpu.dimension_semantics<parallel>], iteration_bounds = array<i64: 1>, scalar_prefetch = 0 : i64, scratch_operands = 4 : i64, tpu.core_type = #tpu.core_type<tc>, window_params = [{transform_indices = @transform_0, window_bounds = array<i64: 2, 4, 256>}, {pipeline_mode = #tpu.pipeline_mode<synchronous>, transform_indices = @transform_1, window_bounds = array<i64: 8, 72>}, {pipeline_mode = #tpu.pipeline_mode<synchronous>, transform_indices = @transform_2, window_bounds = array<i64: 8, 72>}, {pipeline_mode = #tpu.pipeline_mode<synchronous>, transform_indices = @transform_3, window_bounds = array<i64: 1, 256>}, {transform_indices = @transform_4, window_bounds = array<i64: 2, 8, 256>}]} {
    %cst = arith.constant 0.000000e+00 : f32
    %0 = vector.broadcast %cst : f32 to vector<8x128xf32>
    %c0 = arith.constant 0 : index
    %c0_0 = arith.constant 0 : index
    %1 = vector.load %arg6[%c0, %c0_0] : memref<8x512xf32, #tpu.memory_space<vmem>>, vector<8x128xf32>
    tpu.vector_store %arg6[%c0, %c0_0], %0 {strides = array<i32>} : memref<8x512xf32, #tpu.memory_space<vmem>>, vector<8x128xf32>,
    %cst_1 = arith.constant 0.000000e+00 : f32
    %2 = vector.broadcast %cst_1 : f32 to vector<8x128xf32>
    %c0_2 = arith.constant 0 : index
    %c384 = arith.constant 384 : index
    %3 = vector.load %arg6[%c0_2, %c384] : memref<8x512xf32, #tpu.memory_space<vmem>>, vector<8x128xf32>
    tpu.vector_store %arg6[%c0_2, %c384], %2 {strides = array<i32>} : memref<8x512xf32, #tpu.memory_space<vmem>>, vector<8x128xf32>,
    %cst_3 = arith.constant 0.000000e+00 : f32
    %4 = vector.broadcast %cst_3 : f32 to vector<4x256xf32>
    %c4 = arith.constant 4 : index
    %c128 = arith.constant 128 : index
    %5 = vector.load %arg6[%c4, %c128] : memref<8x512xf32, #tpu.memory_space<vmem>>, vector<4x256xf32>
    tpu.vector_store %arg6[%c4, %c128], %4 {strides = array<i32>} : memref<8x512xf32, #tpu.memory_space<vmem>>, vector<4x256xf32>,
    %cst_4 = arith.constant 0.000000e+00 : f32
    %6 = vector.broadcast %cst_4 : f32 to vector<8x128xf32>
    %c0_5 = arith.constant 0 : index
    %c0_6 = arith.constant 0 : index
    %7 = vector.load %arg7[%c0_5, %c0_6] : memref<8x512xf32, #tpu.memory_space<vmem>>, vector<8x128xf32>
    tpu.vector_store %arg7[%c0_5, %c0_6], %6 {strides = array<i32>} : memref<8x512xf32, #tpu.memory_space<vmem>>, vector<8x128xf32>,
    %cst_7 = arith.constant 0.000000e+00 : f32
    %8 = vector.broadcast %cst_7 : f32 to vector<8x128xf32>
    %c0_8 = arith.constant 0 : index
    %c384_9 = arith.constant 384 : index
    %9 = vector.load %arg7[%c0_8, %c384_9] : memref<8x512xf32, #tpu.memory_space<vmem>>, vector<8x128xf32>
    tpu.vector_store %arg7[%c0_8, %c384_9], %8 {strides = array<i32>} : memref<8x512xf32, #tpu.memory_space<vmem>>, vector<8x128xf32>,
    %c0_10 = arith.constant 0 : index
    %c0_11 = arith.constant 0 : index
    %10 = vector.load %arg4[%c0_10, %c0_11] : memref<1x256xi32, #tpu.memory_space<vmem>>, vector<1x256xi32>
    %c0_i32 = arith.constant 0 : i32
    %11 = vector.broadcast %c0_i32 : i32 to vector<1x256xi32>
    %12 = arith.cmpi sgt, %10, %11 : vector<1x256xi32>
    %c15_i32 = arith.constant 15 : i32
    %13 = vector.broadcast %c15_i32 : i32 to vector<1x256xi32>
    %14 = arith.cmpi slt, %10, %13 : vector<1x256xi32>
    %c0_12 = arith.constant 0 : index
    %c0_13 = arith.constant 0 : index
    %15 = vector.load %arg2[%c0_12, %c0_13] : memref<8x72xf32, #tpu.memory_space<vmem>>, vector<8x72xf32>
    %c0_14 = arith.constant 0 : index
    %c0_15 = arith.constant 0 : index
    %16 = vector.load %arg3[%c0_14, %c0_15] : memref<8x72xf32, #tpu.memory_space<vmem>>, vector<8x72xf32>
    %c0_16 = arith.constant 0 : index
    %c0_17 = arith.constant 0 : index
    %c0_18 = arith.constant 0 : index
    %17 = vector.load %arg1[%c0_16, %c0_17, %c0_18] : memref<2x4x256xf32, #tpu.memory_space<vmem>>, vector<1x4x256xf32>
    %18 = vector.shape_cast %17 : vector<1x4x256xf32> to vector<4x256xf32>
    %c0_19 = arith.constant 0 : index
    %c128_20 = arith.constant 128 : index
    %19 = vector.load %arg6[%c0_19, %c128_20] : memref<8x512xf32, #tpu.memory_space<vmem>>, vector<4x256xf32>
    tpu.vector_store %arg6[%c0_19, %c128_20], %18 {strides = array<i32>} : memref<8x512xf32, #tpu.memory_space<vmem>>, vector<4x256xf32>,
    %c0_21 = arith.constant 0 : index
    %c111 = arith.constant 111 : index
    %20 = vector.load %arg6[%c0_21, %c111] : memref<8x512xf32, #tpu.memory_space<vmem>>, vector<8x256xf32>
    %cst_22 = arith.constant 0.000000e+00 : f32
    %21 = vector.broadcast %cst_22 : f32 to vector<8x256xf32>
    %22 = vector.shape_cast %12 : vector<1x256xi1> to vector<1x256xi1>
    %23 = vector.broadcast %22 : vector<1x256xi1> to vector<8x256xi1>
    %24 = arith.select %23, %20, %21 : vector<8x256xi1>, vector<8x256xf32>
    %c0_23 = arith.constant 0 : index
    %c0_24 = arith.constant 0 : index
    %25 = vector.load %arg8[%c0_23, %c0_24] : memref<72x256xf32, #tpu.memory_space<vmem>>, vector<8x256xf32>
    tpu.vector_store %arg8[%c0_23, %c0_24], %24 {strides = array<i32>} : memref<72x256xf32, #tpu.memory_space<vmem>>, vector<8x256xf32>,
    %c0_25 = arith.constant 0 : index
    %c112 = arith.constant 112 : index
    %26 = vector.load %arg6[%c0_25, %c112] : memref<8x512xf32, #tpu.memory_space<vmem>>, vector<8x256xf32>
    %c8 = arith.constant 8 : index
    %c0_26 = arith.constant 0 : index
    %27 = vector.load %arg8[%c8, %c0_26] : memref<72x256xf32, #tpu.memory_space<vmem>>, vector<8x256xf32>
    tpu.vector_store %arg8[%c8, %c0_26], %26 {strides = array<i32>} : memref<72x256xf32, #tpu.memory_space<vmem>>, vector<8x256xf32>,
    %c0_27 = arith.constant 0 : index
    %c113 = arith.constant 113 : index
    %28 = vector.load %arg6[%c0_27, %c113] : memref<8x512xf32, #tpu.memory_space<vmem>>, vector<8x256xf32>
    %cst_28 = arith.constant 0.000000e+00 : f32
    %29 = vector.broadcast %cst_28 : f32 to vector<8x256xf32>
    %30 = vector.shape_cast %14 : vector<1x256xi1> to vector<1x256xi1>
    %31 = vector.broadcast %30 : vector<1x256xi1> to vector<8x256xi1>
    %32 = arith.select %31, %28, %29 : vector<8x256xi1>, vector<8x256xf32>
    %c16 = arith.constant 16 : index
    %c0_29 = arith.constant 0 : index
    %33 = vector.load %arg8[%c16, %c0_29] : memref<72x256xf32, #tpu.memory_space<vmem>>, vector<8x256xf32>
    tpu.vector_store %arg8[%c16, %c0_29], %32 {strides = array<i32>} : memref<72x256xf32, #tpu.memory_space<vmem>>, vector<8x256xf32>,
    %c0_30 = arith.constant 0 : index
    %c127 = arith.constant 127 : index
    %34 = vector.load %arg6[%c0_30, %c127] : memref<8x512xf32, #tpu.memory_space<vmem>>, vector<8x256xf32>
    %cst_31 = arith.constant 0.000000e+00 : f32
    %35 = vector.broadcast %cst_31 : f32 to vector<8x256xf32>
    %36 = vector.shape_cast %12 : vector<1x256xi1> to vector<1x256xi1>
    %37 = vector.broadcast %36 : vector<1x256xi1> to vector<8x256xi1>
    %38 = arith.select %37, %34, %35 : vector<8x256xi1>, vector<8x256xf32>
    %c24 = arith.constant 24 : index
    %c0_32 = arith.constant 0 : index
    %39 = vector.load %arg8[%c24, %c0_32] : memref<72x256xf32, #tpu.memory_space<vmem>>, vector<8x256xf32>
    tpu.vector_store %arg8[%c24, %c0_32], %38 {strides = array<i32>} : memref<72x256xf32, #tpu.memory_space<vmem>>, vector<8x256xf32>,
    %c0_33 = arith.constant 0 : index
    %c128_34 = arith.constant 128 : index
    %40 = vector.load %arg6[%c0_33, %c128_34] : memref<8x512xf32, #tpu.memory_space<vmem>>, vector<8x256xf32>
    %c32 = arith.constant 32 : index
    %c0_35 = arith.constant 0 : index
    %41 = vector.load %arg8[%c32, %c0_35] : memref<72x256xf32, #tpu.memory_space<vmem>>, vector<8x256xf32>
    tpu.vector_store %arg8[%c32, %c0_35], %40 {strides = array<i32>} : memref<72x256xf32, #tpu.memory_space<vmem>>, vector<8x256xf32>,
    %c0_36 = arith.constant 0 : index
    %c129 = arith.constant 129 : index
    %42 = vector.load %arg6[%c0_36, %c129] : memref<8x512xf32, #tpu.memory_space<vmem>>, vector<8x256xf32>
    %cst_37 = arith.constant 0.000000e+00 : f32
    %43 = vector.broadcast %cst_37 : f32 to vector<8x256xf32>
    %44 = vector.shape_cast %14 : vector<1x256xi1> to vector<1x256xi1>
    %45 = vector.broadcast %44 : vector<1x256xi1> to vector<8x256xi1>
    %46 = arith.select %45, %42, %43 : vector<8x256xi1>, vector<8x256xf32>
    %c40 = arith.constant 40 : index
    %c0_38 = arith.constant 0 : index
    %47 = vector.load %arg8[%c40, %c0_38] : memref<72x256xf32, #tpu.memory_space<vmem>>, vector<8x256xf32>
    tpu.vector_store %arg8[%c40, %c0_38], %46 {strides = array<i32>} : memref<72x256xf32, #tpu.memory_space<vmem>>, vector<8x256xf32>,
    %c0_39 = arith.constant 0 : index
    %c143 = arith.constant 143 : index
    %48 = vector.load %arg6[%c0_39, %c143] : memref<8x512xf32, #tpu.memory_space<vmem>>, vector<8x256xf32>
    %cst_40 = arith.constant 0.000000e+00 : f32
    %49 = vector.broadcast %cst_40 : f32 to vector<8x256xf32>
    %50 = vector.shape_cast %12 : vector<1x256xi1> to vector<1x256xi1>
    %51 = vector.broadcast %50 : vector<1x256xi1> to vector<8x256xi1>
    %52 = arith.select %51, %48, %49 : vector<8x256xi1>, vector<8x256xf32>
    %c48 = arith.constant 48 : index
    %c0_41 = arith.constant 0 : index
    %53 = vector.load %arg8[%c48, %c0_41] : memref<72x256xf32, #tpu.memory_space<vmem>>, vector<8x256xf32>
    tpu.vector_store %arg8[%c48, %c0_41], %52 {strides = array<i32>} : memref<72x256xf32, #tpu.memory_space<vmem>>, vector<8x256xf32>,
    %c0_42 = arith.constant 0 : index
    %c144 = arith.constant 144 : index
    %54 = vector.load %arg6[%c0_42, %c144] : memref<8x512xf32, #tpu.memory_space<vmem>>, vector<8x256xf32>
    %c56 = arith.constant 56 : index
    %c0_43 = arith.constant 0 : index
    %55 = vector.load %arg8[%c56, %c0_43] : memref<72x256xf32, #tpu.memory_space<vmem>>, vector<8x256xf32>
    tpu.vector_store %arg8[%c56, %c0_43], %54 {strides = array<i32>} : memref<72x256xf32, #tpu.memory_space<vmem>>, vector<8x256xf32>,
    %c0_44 = arith.constant 0 : index
    %c145 = arith.constant 145 : index
    %56 = vector.load %arg6[%c0_44, %c145] : memref<8x512xf32, #tpu.memory_space<vmem>>, vector<8x256xf32>
    %cst_45 = arith.constant 0.000000e+00 : f32
    %57 = vector.broadcast %cst_45 : f32 to vector<8x256xf32>
    %58 = vector.shape_cast %14 : vector<1x256xi1> to vector<1x256xi1>
    %59 = vector.broadcast %58 : vector<1x256xi1> to vector<8x256xi1>
    %60 = arith.select %59, %56, %57 : vector<8x256xi1>, vector<8x256xf32>
    %c64 = arith.constant 64 : index
    %c0_46 = arith.constant 0 : index
    %61 = vector.load %arg8[%c64, %c0_46] : memref<72x256xf32, #tpu.memory_space<vmem>>, vector<8x256xf32>
    tpu.vector_store %arg8[%c64, %c0_46], %60 {strides = array<i32>} : memref<72x256xf32, #tpu.memory_space<vmem>>, vector<8x256xf32>,
    %c0_47 = arith.constant 0 : index
    %c0_48 = arith.constant 0 : index
    %62 = vector.load %arg8[%c0_47, %c0_48] : memref<72x256xf32, #tpu.memory_space<vmem>>, vector<72x256xf32>
    %cst_49 = arith.constant dense<0.000000e+00> : vector<8x256xf32>
    %63 = tpu.matmul %15, %62, %cst_49 {dimension_numbers = #tpu.dot_dimension_numbers<[1], [0], [0], [1], [0, 0, 1, 1], [], []>} : vector<8x72xf32>, vector<72x256xf32>, vector<8x256xf32> -> vector<8x256xf32>
    %cst_50 = arith.constant dense<0.000000e+00> : vector<8xf32>
    %64 = vector.multi_reduction <add>, %63, %cst_50 [1] : vector<8x256xf32> to vector<8xf32>
    %65 = vector.shape_cast %64 : vector<8xf32> to vector<8x1xf32>
    %cst_51 = arith.constant 2.560000e+02 : f32
    %66 = vector.broadcast %cst_51 : f32 to vector<8x1xf32>
    %67 = arith.divf %65, %66 : vector<8x1xf32>
    %68 = vector.broadcast %67 : vector<8x1xf32> to vector<8x256xf32>
    %69 = arith.subf %63, %68 : vector<8x256xf32>
    %70 = arith.mulf %69, %69 : vector<8x256xf32>
    %cst_52 = arith.constant dense<0.000000e+00> : vector<8xf32>
    %71 = vector.multi_reduction <add>, %70, %cst_52 [1] : vector<8x256xf32> to vector<8xf32>
    %72 = vector.shape_cast %71 : vector<8xf32> to vector<8x1xf32>
    %cst_53 = arith.constant 2.560000e+02 : f32
    %73 = vector.broadcast %cst_53 : f32 to vector<8x1xf32>
    %74 = arith.divf %72, %73 : vector<8x1xf32>
    %cst_54 = arith.constant 9.99999974E-6 : f32
    %75 = vector.broadcast %cst_54 : f32 to vector<8x1xf32>
    %76 = arith.addf %74, %75 : vector<8x1xf32>
    %77 = math.rsqrt %76 : vector<8x1xf32>
    %78 = vector.broadcast %77 : vector<8x1xf32> to vector<8x256xf32>
    %79 = arith.mulf %69, %78 : vector<8x256xf32>
    %cst_55 = arith.constant 0.000000e+00 : f32
    %80 = vector.broadcast %cst_55 : f32 to vector<8x256xf32>
    %81 = arith.cmpf oge, %79, %80 : vector<8x256xf32>
    %cst_56 = arith.constant 2.000000e-01 : f32
    %82 = vector.broadcast %cst_56 : f32 to vector<8x256xf32>
    %83 = arith.mulf %82, %79 : vector<8x256xf32>
    %84 = arith.select %81, %79, %83 : vector<8x256xi1>, vector<8x256xf32>
    %c0_57 = arith.constant 0 : index
    %c128_58 = arith.constant 128 : index
    %85 = vector.load %arg7[%c0_57, %c128_58] : memref<8x512xf32, #tpu.memory_space<vmem>>, vector<8x256xf32>
    tpu.vector_store %arg7[%c0_57, %c128_58], %84 {strides = array<i32>} : memref<8x512xf32, #tpu.memory_space<vmem>>, vector<8x256xf32>,
    %c0_59 = arith.constant 0 : index
    %c111_60 = arith.constant 111 : index
    %86 = vector.load %arg7[%c0_59, %c111_60] : memref<8x512xf32, #tpu.memory_space<vmem>>, vector<8x256xf32>
    %cst_61 = arith.constant 0.000000e+00 : f32
    %87 = vector.broadcast %cst_61 : f32 to vector<8x256xf32>
    %88 = vector.shape_cast %12 : vector<1x256xi1> to vector<1x256xi1>
    %89 = vector.broadcast %88 : vector<1x256xi1> to vector<8x256xi1>
    %90 = arith.select %89, %86, %87 : vector<8x256xi1>, vector<8x256xf32>
    %c0_62 = arith.constant 0 : index
    %c0_63 = arith.constant 0 : index
    %91 = vector.load %arg9[%c0_62, %c0_63] : memref<72x256xf32, #tpu.memory_space<vmem>>, vector<8x256xf32>
    tpu.vector_store %arg9[%c0_62, %c0_63], %90 {strides = array<i32>} : memref<72x256xf32, #tpu.memory_space<vmem>>, vector<8x256xf32>,
    %c0_64 = arith.constant 0 : index
    %c112_65 = arith.constant 112 : index
    %92 = vector.load %arg7[%c0_64, %c112_65] : memref<8x512xf32, #tpu.memory_space<vmem>>, vector<8x256xf32>
    %c8_66 = arith.constant 8 : index
    %c0_67 = arith.constant 0 : index
    %93 = vector.load %arg9[%c8_66, %c0_67] : memref<72x256xf32, #tpu.memory_space<vmem>>, vector<8x256xf32>
    tpu.vector_store %arg9[%c8_66, %c0_67], %92 {strides = array<i32>} : memref<72x256xf32, #tpu.memory_space<vmem>>, vector<8x256xf32>,
    %c0_68 = arith.constant 0 : index
    %c113_69 = arith.constant 113 : index
    %94 = vector.load %arg7[%c0_68, %c113_69] : memref<8x512xf32, #tpu.memory_space<vmem>>, vector<8x256xf32>
    %cst_70 = arith.constant 0.000000e+00 : f32
    %95 = vector.broadcast %cst_70 : f32 to vector<8x256xf32>
    %96 = vector.shape_cast %14 : vector<1x256xi1> to vector<1x256xi1>
    %97 = vector.broadcast %96 : vector<1x256xi1> to vector<8x256xi1>
    %98 = arith.select %97, %94, %95 : vector<8x256xi1>, vector<8x256xf32>
    %c16_71 = arith.constant 16 : index
    %c0_72 = arith.constant 0 : index
    %99 = vector.load %arg9[%c16_71, %c0_72] : memref<72x256xf32, #tpu.memory_space<vmem>>, vector<8x256xf32>
    tpu.vector_store %arg9[%c16_71, %c0_72], %98 {strides = array<i32>} : memref<72x256xf32, #tpu.memory_space<vmem>>, vector<8x256xf32>,
    %c0_73 = arith.constant 0 : index
    %c127_74 = arith.constant 127 : index
    %100 = vector.load %arg7[%c0_73, %c127_74] : memref<8x512xf32, #tpu.memory_space<vmem>>, vector<8x256xf32>
    %cst_75 = arith.constant 0.000000e+00 : f32
    %101 = vector.broadcast %cst_75 : f32 to vector<8x256xf32>
    %102 = vector.shape_cast %12 : vector<1x256xi1> to vector<1x256xi1>
    %103 = vector.broadcast %102 : vector<1x256xi1> to vector<8x256xi1>
    %104 = arith.select %103, %100, %101 : vector<8x256xi1>, vector<8x256xf32>
    %c24_76 = arith.constant 24 : index
    %c0_77 = arith.constant 0 : index
    %105 = vector.load %arg9[%c24_76, %c0_77] : memref<72x256xf32, #tpu.memory_space<vmem>>, vector<8x256xf32>
    tpu.vector_store %arg9[%c24_76, %c0_77], %104 {strides = array<i32>} : memref<72x256xf32, #tpu.memory_space<vmem>>, vector<8x256xf32>,
    %c0_78 = arith.constant 0 : index
    %c128_79 = arith.constant 128 : index
    %106 = vector.load %arg7[%c0_78, %c128_79] : memref<8x512xf32, #tpu.memory_space<vmem>>, vector<8x256xf32>
    %c32_80 = arith.constant 32 : index
    %c0_81 = arith.constant 0 : index
    %107 = vector.load %arg9[%c32_80, %c0_81] : memref<72x256xf32, #tpu.memory_space<vmem>>, vector<8x256xf32>
    tpu.vector_store %arg9[%c32_80, %c0_81], %106 {strides = array<i32>} : memref<72x256xf32, #tpu.memory_space<vmem>>, vector<8x256xf32>,
    %c0_82 = arith.constant 0 : index
    %c129_83 = arith.constant 129 : index
    %108 = vector.load %arg7[%c0_82, %c129_83] : memref<8x512xf32, #tpu.memory_space<vmem>>, vector<8x256xf32>
    %cst_84 = arith.constant 0.000000e+00 : f32
    %109 = vector.broadcast %cst_84 : f32 to vector<8x256xf32>
    %110 = vector.shape_cast %14 : vector<1x256xi1> to vector<1x256xi1>
    %111 = vector.broadcast %110 : vector<1x256xi1> to vector<8x256xi1>
    %112 = arith.select %111, %108, %109 : vector<8x256xi1>, vector<8x256xf32>
    %c40_85 = arith.constant 40 : index
    %c0_86 = arith.constant 0 : index
    %113 = vector.load %arg9[%c40_85, %c0_86] : memref<72x256xf32, #tpu.memory_space<vmem>>, vector<8x256xf32>
    tpu.vector_store %arg9[%c40_85, %c0_86], %112 {strides = array<i32>} : memref<72x256xf32, #tpu.memory_space<vmem>>, vector<8x256xf32>,
    %c0_87 = arith.constant 0 : index
    %c143_88 = arith.constant 143 : index
    %114 = vector.load %arg7[%c0_87, %c143_88] : memref<8x512xf32, #tpu.memory_space<vmem>>, vector<8x256xf32>
    %cst_89 = arith.constant 0.000000e+00 : f32
    %115 = vector.broadcast %cst_89 : f32 to vector<8x256xf32>
    %116 = vector.shape_cast %12 : vector<1x256xi1> to vector<1x256xi1>
    %117 = vector.broadcast %116 : vector<1x256xi1> to vector<8x256xi1>
    %118 = arith.select %117, %114, %115 : vector<8x256xi1>, vector<8x256xf32>
    %c48_90 = arith.constant 48 : index
    %c0_91 = arith.constant 0 : index
    %119 = vector.load %arg9[%c48_90, %c0_91] : memref<72x256xf32, #tpu.memory_space<vmem>>, vector<8x256xf32>
    tpu.vector_store %arg9[%c48_90, %c0_91], %118 {strides = array<i32>} : memref<72x256xf32, #tpu.memory_space<vmem>>, vector<8x256xf32>,
    %c0_92 = arith.constant 0 : index
    %c144_93 = arith.constant 144 : index
    %120 = vector.load %arg7[%c0_92, %c144_93] : memref<8x512xf32, #tpu.memory_space<vmem>>, vector<8x256xf32>
    %c56_94 = arith.constant 56 : index
    %c0_95 = arith.constant 0 : index
    %121 = vector.load %arg9[%c56_94, %c0_95] : memref<72x256xf32, #tpu.memory_space<vmem>>, vector<8x256xf32>
    tpu.vector_store %arg9[%c56_94, %c0_95], %120 {strides = array<i32>} : memref<72x256xf32, #tpu.memory_space<vmem>>, vector<8x256xf32>,
    %c0_96 = arith.constant 0 : index
    %c145_97 = arith.constant 145 : index
    %122 = vector.load %arg7[%c0_96, %c145_97] : memref<8x512xf32, #tpu.memory_space<vmem>>, vector<8x256xf32>
    %cst_98 = arith.constant 0.000000e+00 : f32
    %123 = vector.broadcast %cst_98 : f32 to vector<8x256xf32>
    %124 = vector.shape_cast %14 : vector<1x256xi1> to vector<1x256xi1>
    %125 = vector.broadcast %124 : vector<1x256xi1> to vector<8x256xi1>
    %126 = arith.select %125, %122, %123 : vector<8x256xi1>, vector<8x256xf32>
    %c64_99 = arith.constant 64 : index
    %c0_100 = arith.constant 0 : index
    %127 = vector.load %arg9[%c64_99, %c0_100] : memref<72x256xf32, #tpu.memory_space<vmem>>, vector<8x256xf32>
    tpu.vector_store %arg9[%c64_99, %c0_100], %126 {strides = array<i32>} : memref<72x256xf32, #tpu.memory_space<vmem>>, vector<8x256xf32>,
    %c0_101 = arith.constant 0 : index
    %c0_102 = arith.constant 0 : index
    %128 = vector.load %arg9[%c0_101, %c0_102] : memref<72x256xf32, #tpu.memory_space<vmem>>, vector<72x256xf32>
    %cst_103 = arith.constant dense<0.000000e+00> : vector<8x256xf32>
    %129 = tpu.matmul %16, %128, %cst_103 {dimension_numbers = #tpu.dot_dimension_numbers<[1], [0], [0], [1], [0, 0, 1, 1], [], []>} : vector<8x72xf32>, vector<72x256xf32>, vector<8x256xf32> -> vector<8x256xf32>
    %cst_104 = arith.constant dense<0.000000e+00> : vector<8xf32>
    %130 = vector.multi_reduction <add>, %129, %cst_104 [1] : vector<8x256xf32> to vector<8xf32>
    %131 = vector.shape_cast %130 : vector<8xf32> to vector<8x1xf32>
    %cst_105 = arith.constant 2.560000e+02 : f32
    %132 = vector.broadcast %cst_105 : f32 to vector<8x1xf32>
    %133 = arith.divf %131, %132 : vector<8x1xf32>
    %134 = vector.broadcast %133 : vector<8x1xf32> to vector<8x256xf32>
    %135 = arith.subf %129, %134 : vector<8x256xf32>
    %136 = arith.mulf %135, %135 : vector<8x256xf32>
    %cst_106 = arith.constant dense<0.000000e+00> : vector<8xf32>
    %137 = vector.multi_reduction <add>, %136, %cst_106 [1] : vector<8x256xf32> to vector<8xf32>
    %138 = vector.shape_cast %137 : vector<8xf32> to vector<8x1xf32>
    %cst_107 = arith.constant 2.560000e+02 : f32
    %139 = vector.broadcast %cst_107 : f32 to vector<8x1xf32>
    %140 = arith.divf %138, %139 : vector<8x1xf32>
    %cst_108 = arith.constant 9.99999974E-6 : f32
    %141 = vector.broadcast %cst_108 : f32 to vector<8x1xf32>
    %142 = arith.addf %140, %141 : vector<8x1xf32>
    %143 = math.rsqrt %142 : vector<8x1xf32>
    %144 = vector.broadcast %143 : vector<8x1xf32> to vector<8x256xf32>
    %145 = arith.mulf %135, %144 : vector<8x256xf32>
    %cst_109 = arith.constant 0.000000e+00 : f32
    %146 = vector.broadcast %cst_109 : f32 to vector<8x256xf32>
    %147 = arith.cmpf oge, %145, %146 : vector<8x256xf32>
    %cst_110 = arith.constant 2.000000e-01 : f32
    %148 = vector.broadcast %cst_110 : f32 to vector<8x256xf32>
    %149 = arith.mulf %148, %145 : vector<8x256xf32>
    %150 = arith.select %147, %145, %149 : vector<8x256xi1>, vector<8x256xf32>
    %c0_111 = arith.constant 0 : index
    %c0_112 = arith.constant 0 : index
    %c0_113 = arith.constant 0 : index
    %151 = vector.load %arg5[%c0_111, %c0_112, %c0_113] : memref<2x8x256xf32, #tpu.memory_space<vmem>>, vector<1x8x256xf32>
    %152 = vector.shape_cast %151 : vector<1x8x256xf32> to vector<8x256xf32>
    %153 = vector.shape_cast %150 : vector<8x256xf32> to vector<1x8x256xf32>
    tpu.vector_store %arg5[%c0_111, %c0_112, %c0_113], %153 {strides = array<i32>} : memref<2x8x256xf32, #tpu.memory_space<vmem>>, vector<1x8x256xf32>,
    %c1 = arith.constant 1 : index
    %c0_114 = arith.constant 0 : index
    %c0_115 = arith.constant 0 : index
    %154 = vector.load %arg1[%c1, %c0_114, %c0_115] : memref<2x4x256xf32, #tpu.memory_space<vmem>>, vector<1x4x256xf32>
    %155 = vector.shape_cast %154 : vector<1x4x256xf32> to vector<4x256xf32>
    %c0_116 = arith.constant 0 : index
    %c128_117 = arith.constant 128 : index
    %156 = vector.load %arg6[%c0_116, %c128_117] : memref<8x512xf32, #tpu.memory_space<vmem>>, vector<4x256xf32>
    tpu.vector_store %arg6[%c0_116, %c128_117], %155 {strides = array<i32>} : memref<8x512xf32, #tpu.memory_space<vmem>>, vector<4x256xf32>,
    %c0_118 = arith.constant 0 : index
    %c111_119 = arith.constant 111 : index
    %157 = vector.load %arg6[%c0_118, %c111_119] : memref<8x512xf32, #tpu.memory_space<vmem>>, vector<8x256xf32>
    %cst_120 = arith.constant 0.000000e+00 : f32
    %158 = vector.broadcast %cst_120 : f32 to vector<8x256xf32>
    %159 = vector.shape_cast %12 : vector<1x256xi1> to vector<1x256xi1>
    %160 = vector.broadcast %159 : vector<1x256xi1> to vector<8x256xi1>
    %161 = arith.select %160, %157, %158 : vector<8x256xi1>, vector<8x256xf32>
    %c0_121 = arith.constant 0 : index
    %c0_122 = arith.constant 0 : index
    %162 = vector.load %arg8[%c0_121, %c0_122] : memref<72x256xf32, #tpu.memory_space<vmem>>, vector<8x256xf32>
    tpu.vector_store %arg8[%c0_121, %c0_122], %161 {strides = array<i32>} : memref<72x256xf32, #tpu.memory_space<vmem>>, vector<8x256xf32>,
    %c0_123 = arith.constant 0 : index
    %c112_124 = arith.constant 112 : index
    %163 = vector.load %arg6[%c0_123, %c112_124] : memref<8x512xf32, #tpu.memory_space<vmem>>, vector<8x256xf32>
    %c8_125 = arith.constant 8 : index
    %c0_126 = arith.constant 0 : index
    %164 = vector.load %arg8[%c8_125, %c0_126] : memref<72x256xf32, #tpu.memory_space<vmem>>, vector<8x256xf32>
    tpu.vector_store %arg8[%c8_125, %c0_126], %163 {strides = array<i32>} : memref<72x256xf32, #tpu.memory_space<vmem>>, vector<8x256xf32>,
    %c0_127 = arith.constant 0 : index
    %c113_128 = arith.constant 113 : index
    %165 = vector.load %arg6[%c0_127, %c113_128] : memref<8x512xf32, #tpu.memory_space<vmem>>, vector<8x256xf32>
    %cst_129 = arith.constant 0.000000e+00 : f32
    %166 = vector.broadcast %cst_129 : f32 to vector<8x256xf32>
    %167 = vector.shape_cast %14 : vector<1x256xi1> to vector<1x256xi1>
    %168 = vector.broadcast %167 : vector<1x256xi1> to vector<8x256xi1>
    %169 = arith.select %168, %165, %166 : vector<8x256xi1>, vector<8x256xf32>
    %c16_130 = arith.constant 16 : index
    %c0_131 = arith.constant 0 : index
    %170 = vector.load %arg8[%c16_130, %c0_131] : memref<72x256xf32, #tpu.memory_space<vmem>>, vector<8x256xf32>
    tpu.vector_store %arg8[%c16_130, %c0_131], %169 {strides = array<i32>} : memref<72x256xf32, #tpu.memory_space<vmem>>, vector<8x256xf32>,
    %c0_132 = arith.constant 0 : index
    %c127_133 = arith.constant 127 : index
    %171 = vector.load %arg6[%c0_132, %c127_133] : memref<8x512xf32, #tpu.memory_space<vmem>>, vector<8x256xf32>
    %cst_134 = arith.constant 0.000000e+00 : f32
    %172 = vector.broadcast %cst_134 : f32 to vector<8x256xf32>
    %173 = vector.shape_cast %12 : vector<1x256xi1> to vector<1x256xi1>
    %174 = vector.broadcast %173 : vector<1x256xi1> to vector<8x256xi1>
    %175 = arith.select %174, %171, %172 : vector<8x256xi1>, vector<8x256xf32>
    %c24_135 = arith.constant 24 : index
    %c0_136 = arith.constant 0 : index
    %176 = vector.load %arg8[%c24_135, %c0_136] : memref<72x256xf32, #tpu.memory_space<vmem>>, vector<8x256xf32>
    tpu.vector_store %arg8[%c24_135, %c0_136], %175 {strides = array<i32>} : memref<72x256xf32, #tpu.memory_space<vmem>>, vector<8x256xf32>,
    %c0_137 = arith.constant 0 : index
    %c128_138 = arith.constant 128 : index
    %177 = vector.load %arg6[%c0_137, %c128_138] : memref<8x512xf32, #tpu.memory_space<vmem>>, vector<8x256xf32>
    %c32_139 = arith.constant 32 : index
    %c0_140 = arith.constant 0 : index
    %178 = vector.load %arg8[%c32_139, %c0_140] : memref<72x256xf32, #tpu.memory_space<vmem>>, vector<8x256xf32>
    tpu.vector_store %arg8[%c32_139, %c0_140], %177 {strides = array<i32>} : memref<72x256xf32, #tpu.memory_space<vmem>>, vector<8x256xf32>,
    %c0_141 = arith.constant 0 : index
    %c129_142 = arith.constant 129 : index
    %179 = vector.load %arg6[%c0_141, %c129_142] : memref<8x512xf32, #tpu.memory_space<vmem>>, vector<8x256xf32>
    %cst_143 = arith.constant 0.000000e+00 : f32
    %180 = vector.broadcast %cst_143 : f32 to vector<8x256xf32>
    %181 = vector.shape_cast %14 : vector<1x256xi1> to vector<1x256xi1>
    %182 = vector.broadcast %181 : vector<1x256xi1> to vector<8x256xi1>
    %183 = arith.select %182, %179, %180 : vector<8x256xi1>, vector<8x256xf32>
    %c40_144 = arith.constant 40 : index
    %c0_145 = arith.constant 0 : index
    %184 = vector.load %arg8[%c40_144, %c0_145] : memref<72x256xf32, #tpu.memory_space<vmem>>, vector<8x256xf32>
    tpu.vector_store %arg8[%c40_144, %c0_145], %183 {strides = array<i32>} : memref<72x256xf32, #tpu.memory_space<vmem>>, vector<8x256xf32>,
    %c0_146 = arith.constant 0 : index
    %c143_147 = arith.constant 143 : index
    %185 = vector.load %arg6[%c0_146, %c143_147] : memref<8x512xf32, #tpu.memory_space<vmem>>, vector<8x256xf32>
    %cst_148 = arith.constant 0.000000e+00 : f32
    %186 = vector.broadcast %cst_148 : f32 to vector<8x256xf32>
    %187 = vector.shape_cast %12 : vector<1x256xi1> to vector<1x256xi1>
    %188 = vector.broadcast %187 : vector<1x256xi1> to vector<8x256xi1>
    %189 = arith.select %188, %185, %186 : vector<8x256xi1>, vector<8x256xf32>
    %c48_149 = arith.constant 48 : index
    %c0_150 = arith.constant 0 : index
    %190 = vector.load %arg8[%c48_149, %c0_150] : memref<72x256xf32, #tpu.memory_space<vmem>>, vector<8x256xf32>
    tpu.vector_store %arg8[%c48_149, %c0_150], %189 {strides = array<i32>} : memref<72x256xf32, #tpu.memory_space<vmem>>, vector<8x256xf32>,
    %c0_151 = arith.constant 0 : index
    %c144_152 = arith.constant 144 : index
    %191 = vector.load %arg6[%c0_151, %c144_152] : memref<8x512xf32, #tpu.memory_space<vmem>>, vector<8x256xf32>
    %c56_153 = arith.constant 56 : index
    %c0_154 = arith.constant 0 : index
    %192 = vector.load %arg8[%c56_153, %c0_154] : memref<72x256xf32, #tpu.memory_space<vmem>>, vector<8x256xf32>
    tpu.vector_store %arg8[%c56_153, %c0_154], %191 {strides = array<i32>} : memref<72x256xf32, #tpu.memory_space<vmem>>, vector<8x256xf32>,
    %c0_155 = arith.constant 0 : index
    %c145_156 = arith.constant 145 : index
    %193 = vector.load %arg6[%c0_155, %c145_156] : memref<8x512xf32, #tpu.memory_space<vmem>>, vector<8x256xf32>
    %cst_157 = arith.constant 0.000000e+00 : f32
    %194 = vector.broadcast %cst_157 : f32 to vector<8x256xf32>
    %195 = vector.shape_cast %14 : vector<1x256xi1> to vector<1x256xi1>
    %196 = vector.broadcast %195 : vector<1x256xi1> to vector<8x256xi1>
    %197 = arith.select %196, %193, %194 : vector<8x256xi1>, vector<8x256xf32>
    %c64_158 = arith.constant 64 : index
    %c0_159 = arith.constant 0 : index
    %198 = vector.load %arg8[%c64_158, %c0_159] : memref<72x256xf32, #tpu.memory_space<vmem>>, vector<8x256xf32>
    tpu.vector_store %arg8[%c64_158, %c0_159], %197 {strides = array<i32>} : memref<72x256xf32, #tpu.memory_space<vmem>>, vector<8x256xf32>,
    %c0_160 = arith.constant 0 : index
    %c0_161 = arith.constant 0 : index
    %199 = vector.load %arg8[%c0_160, %c0_161] : memref<72x256xf32, #tpu.memory_space<vmem>>, vector<72x256xf32>
    %cst_162 = arith.constant dense<0.000000e+00> : vector<8x256xf32>
    %200 = tpu.matmul %15, %199, %cst_162 {dimension_numbers = #tpu.dot_dimension_numbers<[1], [0], [0], [1], [0, 0, 1, 1], [], []>} : vector<8x72xf32>, vector<72x256xf32>, vector<8x256xf32> -> vector<8x256xf32>
    %cst_163 = arith.constant dense<0.000000e+00> : vector<8xf32>
    %201 = vector.multi_reduction <add>, %200, %cst_163 [1] : vector<8x256xf32> to vector<8xf32>
    %202 = vector.shape_cast %201 : vector<8xf32> to vector<8x1xf32>
    %cst_164 = arith.constant 2.560000e+02 : f32
    %203 = vector.broadcast %cst_164 : f32 to vector<8x1xf32>
    %204 = arith.divf %202, %203 : vector<8x1xf32>
    %205 = vector.broadcast %204 : vector<8x1xf32> to vector<8x256xf32>
    %206 = arith.subf %200, %205 : vector<8x256xf32>
    %207 = arith.mulf %206, %206 : vector<8x256xf32>
    %cst_165 = arith.constant dense<0.000000e+00> : vector<8xf32>
    %208 = vector.multi_reduction <add>, %207, %cst_165 [1] : vector<8x256xf32> to vector<8xf32>
    %209 = vector.shape_cast %208 : vector<8xf32> to vector<8x1xf32>
    %cst_166 = arith.constant 2.560000e+02 : f32
    %210 = vector.broadcast %cst_166 : f32 to vector<8x1xf32>
    %211 = arith.divf %209, %210 : vector<8x1xf32>
    %cst_167 = arith.constant 9.99999974E-6 : f32
    %212 = vector.broadcast %cst_167 : f32 to vector<8x1xf32>
    %213 = arith.addf %211, %212 : vector<8x1xf32>
    %214 = math.rsqrt %213 : vector<8x1xf32>
    %215 = vector.broadcast %214 : vector<8x1xf32> to vector<8x256xf32>
    %216 = arith.mulf %206, %215 : vector<8x256xf32>
    %cst_168 = arith.constant 0.000000e+00 : f32
    %217 = vector.broadcast %cst_168 : f32 to vector<8x256xf32>
    %218 = arith.cmpf oge, %216, %217 : vector<8x256xf32>
    %cst_169 = arith.constant 2.000000e-01 : f32
    %219 = vector.broadcast %cst_169 : f32 to vector<8x256xf32>
    %220 = arith.mulf %219, %216 : vector<8x256xf32>
    %221 = arith.select %218, %216, %220 : vector<8x256xi1>, vector<8x256xf32>
    %c0_170 = arith.constant 0 : index
    %c128_171 = arith.constant 128 : index
    %222 = vector.load %arg7[%c0_170, %c128_171] : memref<8x512xf32, #tpu.memory_space<vmem>>, vector<8x256xf32>
    tpu.vector_store %arg7[%c0_170, %c128_171], %221 {strides = array<i32>} : memref<8x512xf32, #tpu.memory_space<vmem>>, vector<8x256xf32>,
    %c0_172 = arith.constant 0 : index
    %c111_173 = arith.constant 111 : index
    %223 = vector.load %arg7[%c0_172, %c111_173] : memref<8x512xf32, #tpu.memory_space<vmem>>, vector<8x256xf32>
    %cst_174 = arith.constant 0.000000e+00 : f32
    %224 = vector.broadcast %cst_174 : f32 to vector<8x256xf32>
    %225 = vector.shape_cast %12 : vector<1x256xi1> to vector<1x256xi1>
    %226 = vector.broadcast %225 : vector<1x256xi1> to vector<8x256xi1>
    %227 = arith.select %226, %223, %224 : vector<8x256xi1>, vector<8x256xf32>
    %c0_175 = arith.constant 0 : index
    %c0_176 = arith.constant 0 : index
    %228 = vector.load %arg9[%c0_175, %c0_176] : memref<72x256xf32, #tpu.memory_space<vmem>>, vector<8x256xf32>
    tpu.vector_store %arg9[%c0_175, %c0_176], %227 {strides = array<i32>} : memref<72x256xf32, #tpu.memory_space<vmem>>, vector<8x256xf32>,
    %c0_177 = arith.constant 0 : index
    %c112_178 = arith.constant 112 : index
    %229 = vector.load %arg7[%c0_177, %c112_178] : memref<8x512xf32, #tpu.memory_space<vmem>>, vector<8x256xf32>
    %c8_179 = arith.constant 8 : index
    %c0_180 = arith.constant 0 : index
    %230 = vector.load %arg9[%c8_179, %c0_180] : memref<72x256xf32, #tpu.memory_space<vmem>>, vector<8x256xf32>
    tpu.vector_store %arg9[%c8_179, %c0_180], %229 {strides = array<i32>} : memref<72x256xf32, #tpu.memory_space<vmem>>, vector<8x256xf32>,
    %c0_181 = arith.constant 0 : index
    %c113_182 = arith.constant 113 : index
    %231 = vector.load %arg7[%c0_181, %c113_182] : memref<8x512xf32, #tpu.memory_space<vmem>>, vector<8x256xf32>
    %cst_183 = arith.constant 0.000000e+00 : f32
    %232 = vector.broadcast %cst_183 : f32 to vector<8x256xf32>
    %233 = vector.shape_cast %14 : vector<1x256xi1> to vector<1x256xi1>
    %234 = vector.broadcast %233 : vector<1x256xi1> to vector<8x256xi1>
    %235 = arith.select %234, %231, %232 : vector<8x256xi1>, vector<8x256xf32>
    %c16_184 = arith.constant 16 : index
    %c0_185 = arith.constant 0 : index
    %236 = vector.load %arg9[%c16_184, %c0_185] : memref<72x256xf32, #tpu.memory_space<vmem>>, vector<8x256xf32>
    tpu.vector_store %arg9[%c16_184, %c0_185], %235 {strides = array<i32>} : memref<72x256xf32, #tpu.memory_space<vmem>>, vector<8x256xf32>,
    %c0_186 = arith.constant 0 : index
    %c127_187 = arith.constant 127 : index
    %237 = vector.load %arg7[%c0_186, %c127_187] : memref<8x512xf32, #tpu.memory_space<vmem>>, vector<8x256xf32>
    %cst_188 = arith.constant 0.000000e+00 : f32
    %238 = vector.broadcast %cst_188 : f32 to vector<8x256xf32>
    %239 = vector.shape_cast %12 : vector<1x256xi1> to vector<1x256xi1>
    %240 = vector.broadcast %239 : vector<1x256xi1> to vector<8x256xi1>
    %241 = arith.select %240, %237, %238 : vector<8x256xi1>, vector<8x256xf32>
    %c24_189 = arith.constant 24 : index
    %c0_190 = arith.constant 0 : index
    %242 = vector.load %arg9[%c24_189, %c0_190] : memref<72x256xf32, #tpu.memory_space<vmem>>, vector<8x256xf32>
    tpu.vector_store %arg9[%c24_189, %c0_190], %241 {strides = array<i32>} : memref<72x256xf32, #tpu.memory_space<vmem>>, vector<8x256xf32>,
    %c0_191 = arith.constant 0 : index
    %c128_192 = arith.constant 128 : index
    %243 = vector.load %arg7[%c0_191, %c128_192] : memref<8x512xf32, #tpu.memory_space<vmem>>, vector<8x256xf32>
    %c32_193 = arith.constant 32 : index
    %c0_194 = arith.constant 0 : index
    %244 = vector.load %arg9[%c32_193, %c0_194] : memref<72x256xf32, #tpu.memory_space<vmem>>, vector<8x256xf32>
    tpu.vector_store %arg9[%c32_193, %c0_194], %243 {strides = array<i32>} : memref<72x256xf32, #tpu.memory_space<vmem>>, vector<8x256xf32>,
    %c0_195 = arith.constant 0 : index
    %c129_196 = arith.constant 129 : index
    %245 = vector.load %arg7[%c0_195, %c129_196] : memref<8x512xf32, #tpu.memory_space<vmem>>, vector<8x256xf32>
    %cst_197 = arith.constant 0.000000e+00 : f32
    %246 = vector.broadcast %cst_197 : f32 to vector<8x256xf32>
    %247 = vector.shape_cast %14 : vector<1x256xi1> to vector<1x256xi1>
    %248 = vector.broadcast %247 : vector<1x256xi1> to vector<8x256xi1>
    %249 = arith.select %248, %245, %246 : vector<8x256xi1>, vector<8x256xf32>
    %c40_198 = arith.constant 40 : index
    %c0_199 = arith.constant 0 : index
    %250 = vector.load %arg9[%c40_198, %c0_199] : memref<72x256xf32, #tpu.memory_space<vmem>>, vector<8x256xf32>
    tpu.vector_store %arg9[%c40_198, %c0_199], %249 {strides = array<i32>} : memref<72x256xf32, #tpu.memory_space<vmem>>, vector<8x256xf32>,
    %c0_200 = arith.constant 0 : index
    %c143_201 = arith.constant 143 : index
    %251 = vector.load %arg7[%c0_200, %c143_201] : memref<8x512xf32, #tpu.memory_space<vmem>>, vector<8x256xf32>
    %cst_202 = arith.constant 0.000000e+00 : f32
    %252 = vector.broadcast %cst_202 : f32 to vector<8x256xf32>
    %253 = vector.shape_cast %12 : vector<1x256xi1> to vector<1x256xi1>
    %254 = vector.broadcast %253 : vector<1x256xi1> to vector<8x256xi1>
    %255 = arith.select %254, %251, %252 : vector<8x256xi1>, vector<8x256xf32>
    %c48_203 = arith.constant 48 : index
    %c0_204 = arith.constant 0 : index
    %256 = vector.load %arg9[%c48_203, %c0_204] : memref<72x256xf32, #tpu.memory_space<vmem>>, vector<8x256xf32>
    tpu.vector_store %arg9[%c48_203, %c0_204], %255 {strides = array<i32>} : memref<72x256xf32, #tpu.memory_space<vmem>>, vector<8x256xf32>,
    %c0_205 = arith.constant 0 : index
    %c144_206 = arith.constant 144 : index
    %257 = vector.load %arg7[%c0_205, %c144_206] : memref<8x512xf32, #tpu.memory_space<vmem>>, vector<8x256xf32>
    %c56_207 = arith.constant 56 : index
    %c0_208 = arith.constant 0 : index
    %258 = vector.load %arg9[%c56_207, %c0_208] : memref<72x256xf32, #tpu.memory_space<vmem>>, vector<8x256xf32>
    tpu.vector_store %arg9[%c56_207, %c0_208], %257 {strides = array<i32>} : memref<72x256xf32, #tpu.memory_space<vmem>>, vector<8x256xf32>,
    %c0_209 = arith.constant 0 : index
    %c145_210 = arith.constant 145 : index
    %259 = vector.load %arg7[%c0_209, %c145_210] : memref<8x512xf32, #tpu.memory_space<vmem>>, vector<8x256xf32>
    %cst_211 = arith.constant 0.000000e+00 : f32
    %260 = vector.broadcast %cst_211 : f32 to vector<8x256xf32>
    %261 = vector.shape_cast %14 : vector<1x256xi1> to vector<1x256xi1>
    %262 = vector.broadcast %261 : vector<1x256xi1> to vector<8x256xi1>
    %263 = arith.select %262, %259, %260 : vector<8x256xi1>, vector<8x256xf32>
    %c64_212 = arith.constant 64 : index
    %c0_213 = arith.constant 0 : index
    %264 = vector.load %arg9[%c64_212, %c0_213] : memref<72x256xf32, #tpu.memory_space<vmem>>, vector<8x256xf32>
    tpu.vector_store %arg9[%c64_212, %c0_213], %263 {strides = array<i32>} : memref<72x256xf32, #tpu.memory_space<vmem>>, vector<8x256xf32>,
    %c0_214 = arith.constant 0 : index
    %c0_215 = arith.constant 0 : index
    %265 = vector.load %arg9[%c0_214, %c0_215] : memref<72x256xf32, #tpu.memory_space<vmem>>, vector<72x256xf32>
    %cst_216 = arith.constant dense<0.000000e+00> : vector<8x256xf32>
    %266 = tpu.matmul %16, %265, %cst_216 {dimension_numbers = #tpu.dot_dimension_numbers<[1], [0], [0], [1], [0, 0, 1, 1], [], []>} : vector<8x72xf32>, vector<72x256xf32>, vector<8x256xf32> -> vector<8x256xf32>
    %cst_217 = arith.constant dense<0.000000e+00> : vector<8xf32>
    %267 = vector.multi_reduction <add>, %266, %cst_217 [1] : vector<8x256xf32> to vector<8xf32>
    %268 = vector.shape_cast %267 : vector<8xf32> to vector<8x1xf32>
    %cst_218 = arith.constant 2.560000e+02 : f32
    %269 = vector.broadcast %cst_218 : f32 to vector<8x1xf32>
    %270 = arith.divf %268, %269 : vector<8x1xf32>
    %271 = vector.broadcast %270 : vector<8x1xf32> to vector<8x256xf32>
    %272 = arith.subf %266, %271 : vector<8x256xf32>
    %273 = arith.mulf %272, %272 : vector<8x256xf32>
    %cst_219 = arith.constant dense<0.000000e+00> : vector<8xf32>
    %274 = vector.multi_reduction <add>, %273, %cst_219 [1] : vector<8x256xf32> to vector<8xf32>
    %275 = vector.shape_cast %274 : vector<8xf32> to vector<8x1xf32>
    %cst_220 = arith.constant 2.560000e+02 : f32
    %276 = vector.broadcast %cst_220 : f32 to vector<8x1xf32>
    %277 = arith.divf %275, %276 : vector<8x1xf32>
    %cst_221 = arith.constant 9.99999974E-6 : f32
    %278 = vector.broadcast %cst_221 : f32 to vector<8x1xf32>
    %279 = arith.addf %277, %278 : vector<8x1xf32>
    %280 = math.rsqrt %279 : vector<8x1xf32>
    %281 = vector.broadcast %280 : vector<8x1xf32> to vector<8x256xf32>
    %282 = arith.mulf %272, %281 : vector<8x256xf32>
    %cst_222 = arith.constant 0.000000e+00 : f32
    %283 = vector.broadcast %cst_222 : f32 to vector<8x256xf32>
    %284 = arith.cmpf oge, %282, %283 : vector<8x256xf32>
    %cst_223 = arith.constant 2.000000e-01 : f32
    %285 = vector.broadcast %cst_223 : f32 to vector<8x256xf32>
    %286 = arith.mulf %285, %282 : vector<8x256xf32>
    %287 = arith.select %284, %282, %286 : vector<8x256xi1>, vector<8x256xf32>
    %c1_224 = arith.constant 1 : index
    %c0_225 = arith.constant 0 : index
    %c0_226 = arith.constant 0 : index
    %288 = vector.load %arg5[%c1_224, %c0_225, %c0_226] : memref<2x8x256xf32, #tpu.memory_space<vmem>>, vector<1x8x256xf32>
    %289 = vector.shape_cast %288 : vector<1x8x256xf32> to vector<8x256xf32>
    %290 = vector.shape_cast %287 : vector<8x256xf32> to vector<1x8x256xf32>
    tpu.vector_store %arg5[%c1_224, %c0_225, %c0_226], %290 {strides = array<i32>} : memref<2x8x256xf32, #tpu.memory_space<vmem>>, vector<1x8x256xf32>,
    return
  }
  func.func @transform_0(%arg0: i32) -> (i32, i32, i32) {
    %c0_i32 = arith.constant 0 : i32
    %c0_i32_0 = arith.constant 0 : i32
    %c0_i32_1 = arith.constant 0 : i32
    return %arg0, %c0_i32, %c0_i32_0 : i32, i32, i32
  }
  func.func @transform_1(%arg0: i32) -> (i32, i32) {
    %c0_i32 = arith.constant 0 : i32
    %c0_i32_0 = arith.constant 0 : i32
    %c0_i32_1 = arith.constant 0 : i32
    return %c0_i32, %c0_i32_0 : i32, i32
  }
  func.func @transform_2(%arg0: i32) -> (i32, i32) {
    %c0_i32 = arith.constant 0 : i32
    %c0_i32_0 = arith.constant 0 : i32
    %c0_i32_1 = arith.constant 0 : i32
    return %c0_i32, %c0_i32_0 : i32, i32
  }
  func.func @transform_3(%arg0: i32) -> (i32, i32) {
    %c0_i32 = arith.constant 0 : i32
    %c0_i32_0 = arith.constant 0 : i32
    %c0_i32_1 = arith.constant 0 : i32
    return %c0_i32, %c0_i32_0 : i32, i32
  }
  func.func @transform_4(%arg0: i32) -> (i32, i32, i32) {
    %c0_i32 = arith.constant 0 : i32
    %c0_i32_0 = arith.constant 0 : i32
    %c0_i32_1 = arith.constant 0 : i32
    return %arg0, %c0_i32, %c0_i32_0 : i32, i32, i32
  }
}

</mosaic_0001>

<llo_original>
// kernel: tile.9
$region0: #{tile.9}
  %s0 = inlined_call_operand.vmem [shape: s32[16,16], index: 0, kind: input, shape index: {}]
  %s1 = inlined_call_operand.vmem [shape: s32[1,256], index: 1, kind: output, shape index: {}]
  $region1: #{tile.9} parent=0
    #allocation0 [shape = 'u8[8192]{0}', space=vmem, size = 0x2000, scoped, tag = 'scoped mem for output reshape']
    %s2 = smov 3
    %v3 = vld [vmem:[%s0] ss:$8 sm:%s2]
    %vm4 = vcmask 130048
    %5 = vst.msk [vmem:[#allocation0] ss:$8 sm:$0x3] %vm4, %v3
    %s6 = scalar_lea.vmem %s0, 7
    %s7 = smov 3
    %v8 = vld [vmem:[%s6] ss:$8 sm:%s7]
    %9 = vrot.lane.b32.xlu0 %v8, 112
    %v10 = vpop.permute.xlu0 %9
    %vm11 = vcmask 1048448
    %12 = vst.msk [vmem:[#allocation0] ss:$8 sm:$0x3] %vm11, %v10
    %s13 = scalar_lea.vmem %s0, 6
    %s14 = smov 3
    %v15 = vld [vmem:[%s13] ss:$8 sm:%s14]
    %16 = vrot.lane.b32.xlu0 %v15, 96
    %v17 = vpop.permute.xlu0 %16
    %vm18 = vcmask 917248
    %19 = vst.msk [vmem:[#allocation0] ss:$8 sm:$0x3] %vm18, %v17
    %s20 = scalar_lea.vmem %s0, 5
    %s21 = smov 3
    %v22 = vld [vmem:[%s20] ss:$8 sm:%s21]
    %23 = vrot.lane.b32.xlu0 %v22, 80
    %v24 = vpop.permute.xlu0 %23
    %vm25 = vcmask 786048
    %26 = vst.msk [vmem:[#allocation0] ss:$8 sm:$0x3] %vm25, %v24
    %s27 = scalar_lea.vmem %s0, 4
    %s28 = smov 3
    %v29 = vld [vmem:[%s27] ss:$8 sm:%s28]
    %30 = vrot.lane.b32.xlu0 %v29, 64
    %v31 = vpop.permute.xlu0 %30
    %vm32 = vcmask 654848
    %33 = vst.msk [vmem:[#allocation0] ss:$8 sm:$0x3] %vm32, %v31
    %s34 = scalar_lea.vmem %s0, 3
    %s35 = smov 3
    %v36 = vld [vmem:[%s34] ss:$8 sm:%s35]
    %37 = vrot.lane.b32.xlu0 %v36, 48
    %v38 = vpop.permute.xlu0 %37
    %vm39 = vcmask 523648
    %40 = vst.msk [vmem:[#allocation0] ss:$8 sm:$0x3] %vm39, %v38
    %s41 = scalar_lea.vmem %s0, 2
    %s42 = smov 3
    %v43 = vld [vmem:[%s41] ss:$8 sm:%s42]
    %44 = vrot.lane.b32.xlu0 %v43, 32
    %v45 = vpop.permute.xlu0 %44
    %vm46 = vcmask 392448
    %47 = vst.msk [vmem:[#allocation0] ss:$8 sm:$0x3] %vm46, %v45
    %s48 = scalar_lea.vmem %s0, 1
    %s49 = smov 3
    %v50 = vld [vmem:[%s48] ss:$8 sm:%s49]
    %51 = vrot.lane.b32.xlu0 %v50, 16
    %v52 = vpop.permute.xlu0 %51
    %vm53 = vcmask 261248
    %54 = vst.msk [vmem:[#allocation0] ss:$8 sm:$0x3] %vm53, %v52
    %s56 = sshllo.u32 0, 1
    %v58 = vld [vmem:[#allocation0] sm:%s56]
    %s59 = sshllo.u32 0, 1
    %60 = vst [vmem:[%s1] sm:%s59] %v58
    %s61 = scalar_lea.vmem [#allocation0], 8
    %v62 = vld [vmem:[%s61] sm:%s56]
    %s63 = sshllo.u32 0, 1
    %s64 = scalar_lea.vmem %s1, 1
    %65 = vst [vmem:[%s64] sm:%s63] %v62

// kernel: conv_block_forward.1
$region0: #{conv_block_forward.1}
  #allocation0 [shape = 'u32[]', space=smem, size = 0x4, offset = 0x4, fixed_abs, tag = 'smem constant byte address 0x4 - core index']
  #allocation1 [shape = 'u32[144,128]{1,0:T(1,128)}', space=vmem, size = 0x12000, scoped, tag = 'internal scratch']
  #allocation2 [shape = 'f32[8,512]{1,0:T(8,128)}', space=vmem, size = 0x4000, scoped, tag = 'scratch operand']
  #allocation3 [shape = 'f32[8,512]{1,0:T(8,128)}', space=vmem, size = 0x4000, scoped, tag = 'scratch operand']
  #allocation4 [shape = 'f32[72,256]{1,0:T(8,128)}', space=vmem, size = 0x12000, scoped, tag = 'scratch operand']
  #allocation5 [shape = 'f32[72,256]{1,0:T(8,128)}', space=vmem, size = 0x12000, scoped, tag = 'scratch operand']
  %s0 = inlined_call_operand.vmem [shape: f32[2,4,256], index: 0, kind: input, shape index: {}]
  %s1 = inlined_call_operand.vmem [shape: f32[8,72], index: 1, kind: input, shape index: {}]
  %s2 = inlined_call_operand.vmem [shape: f32[8,72], index: 2, kind: input, shape index: {}]
  %s3 = inlined_call_operand.vmem [shape: s32[1,256], index: 3, kind: input, shape index: {}]
  %s4 = inlined_call_operand.vmem [shape: f32[2,8,256], index: 4, kind: output, shape index: {}]
  %s5 = sld [smem:[#allocation0]]
  $region26: #{conv_block_forward.1} parent=0
    _
  %s7 = ssub.s32 1, %s5
  %s8 = scalar_select 0, %s7, %s5
  // Predicated region
  $region2: #{conv_block_forward.1} parent=0 // pred_check
    _
  $region3: #{conv_block_forward.1} parent=0 // pred_check_branch
    %10 = sbr.rel (0) target = $region5
  $region4: #{conv_block_forward.1} parent=0 // pred_region
    _
  $region5: #{conv_block_forward.1} parent=0 // pred_fallthru
    _
  // Predicated region
  $region6: #{conv_block_forward.1} parent=0 // pred_check
    _
  $region7: #{conv_block_forward.1} parent=0 // pred_check_branch
    %12 = sbr.rel (0) target = $region9
  $region8: #{conv_block_forward.1} parent=0 // pred_region
    _
  $region9: #{conv_block_forward.1} parent=0 // pred_fallthru
    _
  // Predicated region
  $region10: #{conv_block_forward.1} parent=0 // pred_check
    _
  $region11: #{conv_block_forward.1} parent=0 // pred_check_branch
    %14 = sbr.rel (0) target = $region13
  $region12: #{conv_block_forward.1} parent=0 // pred_region
    _
  $region13: #{conv_block_forward.1} parent=0 // pred_fallthru
    _
  // Predicated region
  $region14: #{conv_block_forward.1} parent=0 // pred_check
    _
  $region15: #{conv_block_forward.1} parent=0 // pred_check_branch
    %16 = sbr.rel (0) target = $region17
  $region16: #{conv_block_forward.1} parent=0 // pred_region
    _
  $region17: #{conv_block_forward.1} parent=0 // pred_fallthru
    _
  %17 = vst [vmem:[#allocation2] sm:$0xff] 0.0
  %18 = vst [vmem:[#allocation2 + $0x18] sm:$0xff] 0.0
  %19 = vst [vmem:[#allocation2 + $0x8] sm:$0xf0] 0.0
  %20 = vst [vmem:[#allocation2 + $0x10] sm:$0xf0] 0.0
  %21 = vst [vmem:[#allocation3] sm:$0xff] 0.0
  %22 = vst [vmem:[#allocation3 + $0x18] sm:$0xff] 0.0
  %v23 = vld [vmem:[%s3] sm:$0x3]
  %vm24 = vcmp.gt.s32.totalorder %v23, 0
  %vm25 = vcmp.lt.s32.totalorder %v23, 15
  %v26 = vld [vmem:[%s1] sm:$0xff]
  %v27 = vld [vmem:[%s2] sm:$0xff]
  %v28 = vld [vmem:[%s0] sm:$0xff]
  %v30 = vcombine.high %v28, %v28
  %32 = vst [vmem:[#allocation2 + $0x8] sm:$0xf] %v28
  %33 = vst [vmem:[#allocation2 + $0x10] sm:$0xf] %v30
  %v34 = vld [vmem:[#allocation2] sm:$0xff]
  %v35 = vld [vmem:[#allocation2 + $0x8] sm:$0xff]
  %v36 = vld [vmem:[#allocation2 + $0x10] sm:$0xff]
  %v37 = vsel %vm24, 1, 0
  %v38 = vlaneseq
  %v39 = vshrl.u32 %v38, 7
  %v40 = vsub.s32 0, %v39
  %v41 = vrot.slane %v37, %v40
  %v42 = vlaneseq
  %v43 = vshrl.u32 %v42, 7
  %v44 = vsub.s32 1, %v43
  %v45 = vrot.slane %v37, %v44
  %vm46 = vcmp.eq.s32.totalorder %v41, 1
  %vm47 = vcmp.eq.s32.totalorder %v45, 1
  %51 = vrot.lane.b32.xlu0 %v34, 17
  %v52 = vpop.permute.xlu0 %51
  %53 = vrot.lane.b32.xlu0 %v35, 17
  %v54 = vpop.permute.xlu0 %53
  %55 = vrot.lane.b32.xlu0 %v36, 17
  %v56 = vpop.permute.xlu0 %55
  %vm57 = vcmask 138240
  %v58 = vsel %vm57, %v52, %v54
  %v59 = vsel %vm57, %v54, %v56
  %v62 = vsel %vm46, %v58, 0.0
  %v63 = vsel %vm47, %v59, 0.0
  %64 = vst [vmem:[#allocation4] sm:$0xff] %v62
  %65 = vst [vmem:[#allocation4 + $0x8] sm:$0xff] %v63
  %v66 = vld [vmem:[#allocation2] sm:$0xff]
  %v67 = vld [vmem:[#allocation2 + $0x8] sm:$0xff]
  %v68 = vld [vmem:[#allocation2 + $0x10] sm:$0xff]
  %72 = vrot.lane.b32.xlu0 %v66, 16
  %v73 = vpop.permute.xlu0 %72
  %74 = vrot.lane.b32.xlu0 %v67, 16
  %v75 = vpop.permute.xlu0 %74
  %76 = vrot.lane.b32.xlu0 %v68, 16
  %v77 = vpop.permute.xlu0 %76
  %vm78 = vcmask 130048
  %v79 = vsel %vm78, %v73, %v75
  %v80 = vsel %vm78, %v75, %v77
  %83 = vst [vmem:[#allocation4 + $0x10] sm:$0xff] %v79
  %84 = vst [vmem:[#allocation4 + $0x18] sm:$0xff] %v80
  %v85 = vld [vmem:[#allocation2] sm:$0xff]
  %v86 = vld [vmem:[#allocation2 + $0x8] sm:$0xff]
  %v87 = vld [vmem:[#allocation2 + $0x10] sm:$0xff]
  %v88 = vsel %vm25, 1, 0
  %v89 = vlaneseq
  %v90 = vshrl.u32 %v89, 7
  %v91 = vsub.s32 0, %v90
  %v92 = vrot.slane %v88, %v91
  %v93 = vlaneseq
  %v94 = vshrl.u32 %v93, 7
  %v95 = vsub.s32 1, %v94
  %v96 = vrot.slane %v88, %v95
  %vm97 = vcmp.eq.s32.totalorder %v92, 1
  %vm98 = vcmp.eq.s32.totalorder %v96, 1
  %102 = vrot.lane.b32.xlu0 %v85, 15
  %v103 = vpop.permute.xlu0 %102
  %104 = vrot.lane.b32.xlu0 %v86, 15
  %v105 = vpop.permute.xlu0 %104
  %106 = vrot.lane.b32.xlu0 %v87, 15
  %v107 = vpop.permute.xlu0 %106
  %vm108 = vcmask 121856
  %v109 = vsel %vm108, %v103, %v105
  %v110 = vsel %vm108, %v105, %v107
  %v113 = vsel %vm97, %v109, 0.0
  %v114 = vsel %vm98, %v110, 0.0
  %115 = vst [vmem:[#allocation4 + $0x20] sm:$0xff] %v113
  %116 = vst [vmem:[#allocation4 + $0x28] sm:$0xff] %v114
  %v117 = vld [vmem:[#allocation2] sm:$0xff]
  %v118 = vld [vmem:[#allocation2 + $0x8] sm:$0xff]
  %v119 = vld [vmem:[#allocation2 + $0x10] sm:$0xff]
  %123 = vrot.lane.b32.xlu0 %v117, 1
  %v124 = vpop.permute.xlu0 %123
  %125 = vrot.lane.b32.xlu0 %v118, 1
  %v126 = vpop.permute.xlu0 %125
  %127 = vrot.lane.b32.xlu0 %v119, 1
  %v128 = vpop.permute.xlu0 %127
  %vm129 = vcmask 7168
  %v130 = vsel %vm129, %v124, %v126
  %v131 = vsel %vm129, %v126, %v128
  %v134 = vsel %vm46, %v130, 0.0
  %v135 = vsel %vm47, %v131, 0.0
  %136 = vst [vmem:[#allocation4 + $0x30] sm:$0xff] %v134
  %137 = vst [vmem:[#allocation4 + $0x38] sm:$0xff] %v135
  %v138 = vld [vmem:[#allocation2 + $0x8] sm:$0xff]
  %v139 = vld [vmem:[#allocation2 + $0x10] sm:$0xff]
  %140 = vst [vmem:[#allocation4 + $0x40] sm:$0xff] %v138
  %141 = vst [vmem:[#allocation4 + $0x48] sm:$0xff] %v139
  %v142 = vld [vmem:[#allocation2 + $0x8] sm:$0xff]
  %v143 = vld [vmem:[#allocation2 + $0x10] sm:$0xff]
  %v144 = vld [vmem:[#allocation2 + $0x18] sm:$0xff]
  %148 = vrot.lane.b32.xlu0 %v142, 127
  %v149 = vpop.permute.xlu0 %148
  %150 = vrot.lane.b32.xlu0 %v143, 127
  %v151 = vpop.permute.xlu0 %150
  %152 = vrot.lane.b32.xlu0 %v144, 127
  %v153 = vpop.permute.xlu0 %152
  %vm154 = vcmask 1039360
  %v155 = vsel %vm154, %v149, %v151
  %v156 = vsel %vm154, %v151, %v153
  %v159 = vsel %vm97, %v155, 0.0
  %v160 = vsel %vm98, %v156, 0.0
  %161 = vst [vmem:[#allocation4 + $0x50] sm:$0xff] %v159
  %162 = vst [vmem:[#allocation4 + $0x58] sm:$0xff] %v160
  %v163 = vld [vmem:[#allocation2 + $0x8] sm:$0xff]
  %v164 = vld [vmem:[#allocation2 + $0x10] sm:$0xff]
  %v165 = vld [vmem:[#allocation2 + $0x18] sm:$0xff]
  %169 = vrot.lane.b32.xlu0 %v163, 113
  %v170 = vpop.permute.xlu0 %169
  %171 = vrot.lane.b32.xlu0 %v164, 113
  %v172 = vpop.permute.xlu0 %171
  %173 = vrot.lane.b32.xlu0 %v165, 113
  %v174 = vpop.permute.xlu0 %173
  %vm175 = vcmask 924672
  %v176 = vsel %vm175, %v170, %v172
  %v177 = vsel %vm175, %v172, %v174
  %v180 = vsel %vm46, %v176, 0.0
  %v181 = vsel %vm47, %v177, 0.0
  %182 = vst [vmem:[#allocation4 + $0x60] sm:$0xff] %v180
  %183 = vst [vmem:[#allocation4 + $0x68] sm:$0xff] %v181
  %v184 = vld [vmem:[#allocation2 + $0x8] sm:$0xff]
  %v185 = vld [vmem:[#allocation2 + $0x10] sm:$0xff]
  %v186 = vld [vmem:[#allocation2 + $0x18] sm:$0xff]
  %190 = vrot.lane.b32.xlu0 %v184, 112
  %v191 = vpop.permute.xlu0 %190
  %192 = vrot.lane.b32.xlu0 %v185, 112
  %v193 = vpop.permute.xlu0 %192
  %194 = vrot.lane.b32.xlu0 %v186, 112
  %v195 = vpop.permute.xlu0 %194
  %vm196 = vcmask 916480
  %v197 = vsel %vm196, %v191, %v193
  %v198 = vsel %vm196, %v193, %v195
  %201 = vst [vmem:[#allocation4 + $0x70] sm:$0xff] %v197
  %202 = vst [vmem:[#allocation4 + $0x78] sm:$0xff] %v198
  %v203 = vld [vmem:[#allocation2 + $0x8] sm:$0xff]
  %v204 = vld [vmem:[#allocation2 + $0x10] sm:$0xff]
  %v205 = vld [vmem:[#allocation2 + $0x18] sm:$0xff]
  %209 = vrot.lane.b32.xlu0 %v203, 111
  %v210 = vpop.permute.xlu0 %209
  %211 = vrot.lane.b32.xlu0 %v204, 111
  %v212 = vpop.permute.xlu0 %211
  %213 = vrot.lane.b32.xlu0 %v205, 111
  %v214 = vpop.permute.xlu0 %213
  %vm215 = vcmask 908288
  %v216 = vsel %vm215, %v210, %v212
  %v217 = vsel %vm215, %v212, %v214
  %v220 = vsel %vm97, %v216, 0.0
  %v221 = vsel %vm98, %v217, 0.0
  %222 = vst [vmem:[#allocation4 + $0x80] sm:$0xff] %v220
  %223 = vst [vmem:[#allocation4 + $0x88] sm:$0xff] %v221
  %v224 = vld [vmem:[#allocation4] sm:$0xff]
  %v225 = vld [vmem:[#allocation4 + $0x8] sm:$0xff]
  %v226 = vld [vmem:[#allocation4 + $0x10] sm:$0xff]
  %v227 = vld [vmem:[#allocation4 + $0x18] sm:$0xff]
  %v228 = vld [vmem:[#allocation4 + $0x20] sm:$0xff]
  %v229 = vld [vmem:[#allocation4 + $0x28] sm:$0xff]
  %v230 = vld [vmem:[#allocation4 + $0x30] sm:$0xff]
  %v231 = vld [vmem:[#allocation4 + $0x38] sm:$0xff]
  %v232 = vld [vmem:[#allocation4 + $0x40] sm:$0xff]
  %v233 = vld [vmem:[#allocation4 + $0x48] sm:$0xff]
  %v234 = vld [vmem:[#allocation4 + $0x50] sm:$0xff]
  %v235 = vld [vmem:[#allocation4 + $0x58] sm:$0xff]
  %v236 = vld [vmem:[#allocation4 + $0x60] sm:$0xff]
  %v237 = vld [vmem:[#allocation4 + $0x68] sm:$0xff]
  %v238 = vld [vmem:[#allocation4 + $0x70] sm:$0xff]
  %v239 = vld [vmem:[#allocation4 + $0x78] sm:$0xff]
  %v240 = vld [vmem:[#allocation4 + $0x80] sm:$0xff]
  %v241 = vld [vmem:[#allocation4 + $0x88] sm:$0xff]
  %vm242 = vcmask 588800
  %v244 = vsel %vm242, %v26, 0
  %246 = vmatprep.subr.mxu0 %v225
  %247 = vmatpush1.msra.mxu0 %v224
  %248 = vmatprep.subr.mxu0 %v227
  %249 = vmatpush1.msra.mxu0 %v226
  %250 = vmatprep.subr.mxu0 %v229
  %251 = vmatpush1.msra.mxu0 %v228
  %252 = vmatprep.subr.mxu0 %v231
  %253 = vmatpush1.msra.mxu0 %v230
  %254 = vmatprep.subr.mxu0 %v233
  %255 = vmatpush1.msra.mxu0 %v232
  %256 = vmatprep.subr.mxu0 %v235
  %257 = vmatpush1.msra.mxu0 %v234
  %258 = vmatprep.subr.mxu0 %v237
  %259 = vmatpush1.msra.mxu0 %v236
  %260 = vmatprep.subr.mxu0 %v239
  %261 = vmatpush1.msra.mxu0 %v238
  %262 = vmatprep.subr.mxu0 %v241
  %263 = vmatpush1.msra.mxu0 %v240
  %264 = vmatprep.subr.mxu0 0.0
  %265 = vmatpush1.msra.mxu0 0.0
  %266 = vmatprep.subr.mxu0 0.0
  %267 = vmatpush1.msra.mxu0 0.0
  %268 = vmatprep.subr.mxu0 0.0
  %269 = vmatpush1.msra.mxu0 0.0
  %270 = vmatprep.subr.mxu0 0.0
  %271 = vmatpush1.msra.mxu0 0.0
  %272 = vmatprep.subr.mxu0 0.0
  %273 = vmatpush1.msra.mxu0 0.0
  %274 = vmatprep.subr.mxu0 0.0
  %275 = vmatpush1.msra.mxu0 0.0
  %276 = vmatprep.subr.mxu0 0.0
  %277 = vmatpush1.msra.mxu0 0.0
  %278 = vmatprep.subr.mxu0 0.0
  %279 = vmatpush1.msra.mxu0 0.0
  %280 = vmatprep.subr.mxu0 0.0
  %281 = vmatpush1.msra.mxu0 0.0
  %282 = vmatprep.subr.mxu0 0.0
  %283 = vmatpush1.msra.mxu0 0.0
  %284 = vmatprep.subr.mxu0 0.0
  %285 = vmatpush1.msra.mxu0 0.0
  %286 = vmatprep.subr.mxu0 0.0
  %287 = vmatpush1.msra.mxu0 0.0
  %288 = vmatprep.subr.mxu0 0.0
  %289 = vmatpush1.msra.mxu0 0.0
  %290 = vmatprep.subr.mxu0 0.0
  %291 = vmatpush1.msra.mxu0 0.0
  %292 = vmatprep.subr.mxu0 0.0
  %293 = vmatpush1.msra.mxu0 0.0
  %294 = vmatprep.subr.mxu0 0.0
  %295 = vmatpush1.msra.mxu0 0.0
  %296 = vmatprep.subr.mxu0 0.0
  %297 = vmatpush1.msra.mxu0 0.0
  %298 = vmatprep.subr.mxu0 0.0
  %299 = vmatpush1.msra.mxu0 0.0
  %300 = vmatprep.subr.mxu0 0.0
  %301 = vmatpush1.msra.mxu0 0.0
  %302 = vmatprep.subr.mxu0 0.0
  %303 = vmatpush1.msra.mxu0 0.0
  %304 = vmatprep.subr.mxu0 0.0
  %305 = vmatpush1.msra.mxu0 0.0
  %306 = vmatprep.subr.mxu0 0.0
  %307 = vmatpush1.msra.mxu0 0.0
  %308 = vmatprep.subr.mxu0 0.0
  %309 = vmatpush1.msra.mxu0 0.0
  %310 = vmatprep.mubr.f32.mxu0 0.0
  %311 = vmatmul.mubr.f32.gmra.mrb[0].mxu0 %v244
  %v312 = vpop.f32.mrb[0].mxu0
  %v313 = vadd.f32 0.0, %v312
  %v314 = vpop.f32.mrb[0].mxu0
  %v315 = vadd.f32 0.0, %v314
  %316 = vdwg.mxu0
  %v317 = vadd.f32 %v313, %v315
  %318 = vadd.xlane.f32.xlu0 %v317
  %v319 = vpop.xlane.xlu0 %318
  %v320 = vrcp.pop 256.0
  %v321 = vmul.f32 %v319, %v320
  %v322 = vsub.f32 %v313, %v321
  %v323 = vsub.f32 %v315, %v321
  %v324 = vmul.f32 %v322, %v322
  %v325 = vmul.f32 %v323, %v323
  %v326 = vadd.f32 %v324, %v325
  %327 = vadd.xlane.f32.xlu0 %v326
  %v328 = vpop.xlane.xlu0 %327
  %v329 = vmul.f32 %v328, %v320
  %v330 = vadd.f32 %v329, 1e-05
  %v331 = vrsqrt.pop %v330
  %v332 = vmul.f32 %v322, %v331
  %v333 = vmul.f32 %v323, %v331
  %vm334 = vcmp.ge.f32.partialorder %v332, 0.0
  %vm335 = vcmp.ge.f32.partialorder %v333, 0.0
  %v336 = vmul.f32 %v332, 0.2
  %v337 = vmul.f32 %v333, 0.2
  %v338 = vsel %vm334, %v332, %v336
  %v339 = vsel %vm335, %v333, %v337
  %340 = vst [vmem:[#allocation3 + $0x8] sm:$0xff] %v338
  %341 = vst [vmem:[#allocation3 + $0x10] sm:$0xff] %v339
  %v342 = vld [vmem:[#allocation3] sm:$0xff]
  %v343 = vld [vmem:[#allocation3 + $0x8] sm:$0xff]
  %v344 = vld [vmem:[#allocation3 + $0x10] sm:$0xff]
  %348 = vrot.lane.b32.xlu0 %v342, 17
  %v349 = vpop.permute.xlu0 %348
  %350 = vrot.lane.b32.xlu0 %v343, 17
  %v351 = vpop.permute.xlu0 %350
  %352 = vrot.lane.b32.xlu0 %v344, 17
  %v353 = vpop.permute.xlu0 %352
  %v354 = vsel %vm57, %v349, %v351
  %v355 = vsel %vm57, %v351, %v353
  %v358 = vsel %vm46, %v354, 0.0
  %v359 = vsel %vm47, %v355, 0.0
  %360 = vst [vmem:[#allocation5] sm:$0xff] %v358
  %361 = vst [vmem:[#allocation5 + $0x8] sm:$0xff] %v359
  %v362 = vld [vmem:[#allocation3] sm:$0xff]
  %v363 = vld [vmem:[#allocation3 + $0x8] sm:$0xff]
  %v364 = vld [vmem:[#allocation3 + $0x10] sm:$0xff]
  %368 = vrot.lane.b32.xlu0 %v362, 16
  %v369 = vpop.permute.xlu0 %368
  %370 = vrot.lane.b32.xlu0 %v363, 16
  %v371 = vpop.permute.xlu0 %370
  %372 = vrot.lane.b32.xlu0 %v364, 16
  %v373 = vpop.permute.xlu0 %372
  %v374 = vsel %vm78, %v369, %v371
  %v375 = vsel %vm78, %v371, %v373
  %378 = vst [vmem:[#allocation5 + $0x10] sm:$0xff] %v374
  %379 = vst [vmem:[#allocation5 + $0x18] sm:$0xff] %v375
  %v380 = vld [vmem:[#allocation3] sm:$0xff]
  %v381 = vld [vmem:[#allocation3 + $0x8] sm:$0xff]
  %v382 = vld [vmem:[#allocation3 + $0x10] sm:$0xff]
  %386 = vrot.lane.b32.xlu0 %v380, 15
  %v387 = vpop.permute.xlu0 %386
  %388 = vrot.lane.b32.xlu0 %v381, 15
  %v389 = vpop.permute.xlu0 %388
  %390 = vrot.lane.b32.xlu0 %v382, 15
  %v391 = vpop.permute.xlu0 %390
  %v392 = vsel %vm108, %v387, %v389
  %v393 = vsel %vm108, %v389, %v391
  %v396 = vsel %vm97, %v392, 0.0
  %v397 = vsel %vm98, %v393, 0.0
  %398 = vst [vmem:[#allocation5 + $0x20] sm:$0xff] %v396
  %399 = vst [vmem:[#allocation5 + $0x28] sm:$0xff] %v397
  %v400 = vld [vmem:[#allocation3] sm:$0xff]
  %v401 = vld [vmem:[#allocation3 + $0x8] sm:$0xff]
  %v402 = vld [vmem:[#allocation3 + $0x10] sm:$0xff]
  %406 = vrot.lane.b32.xlu0 %v400, 1
  %v407 = vpop.permute.xlu0 %406
  %408 = vrot.lane.b32.xlu0 %v401, 1
  %v409 = vpop.permute.xlu0 %408
  %410 = vrot.lane.b32.xlu0 %v402, 1
  %v411 = vpop.permute.xlu0 %410
  %v412 = vsel %vm129, %v407, %v409
  %v413 = vsel %vm129, %v409, %v411
  %v416 = vsel %vm46, %v412, 0.0
  %v417 = vsel %vm47, %v413, 0.0
  %418 = vst [vmem:[#allocation5 + $0x30] sm:$0xff] %v416
  %419 = vst [vmem:[#allocation5 + $0x38] sm:$0xff] %v417
  %v420 = vld [vmem:[#allocation3 + $0x8] sm:$0xff]
  %v421 = vld [vmem:[#allocation3 + $0x10] sm:$0xff]
  %422 = vst [vmem:[#allocation5 + $0x40] sm:$0xff] %v420
  %423 = vst [vmem:[#allocation5 + $0x48] sm:$0xff] %v421
  %v424 = vld [vmem:[#allocation3 + $0x8] sm:$0xff]
  %v425 = vld [vmem:[#allocation3 + $0x10] sm:$0xff]
  %v426 = vld [vmem:[#allocation3 + $0x18] sm:$0xff]
  %430 = vrot.lane.b32.xlu0 %v424, 127
  %v431 = vpop.permute.xlu0 %430
  %432 = vrot.lane.b32.xlu0 %v425, 127
  %v433 = vpop.permute.xlu0 %432
  %434 = vrot.lane.b32.xlu0 %v426, 127
  %v435 = vpop.permute.xlu0 %434
  %v436 = vsel %vm154, %v431, %v433
  %v437 = vsel %vm154, %v433, %v435
  %v440 = vsel %vm97, %v436, 0.0
  %v441 = vsel %vm98, %v437, 0.0
  %442 = vst [vmem:[#allocation5 + $0x50] sm:$0xff] %v440
  %443 = vst [vmem:[#allocation5 + $0x58] sm:$0xff] %v441
  %v444 = vld [vmem:[#allocation3 + $0x8] sm:$0xff]
  %v445 = vld [vmem:[#allocation3 + $0x10] sm:$0xff]
  %v446 = vld [vmem:[#allocation3 + $0x18] sm:$0xff]
  %450 = vrot.lane.b32.xlu0 %v444, 113
  %v451 = vpop.permute.xlu0 %450
  %452 = vrot.lane.b32.xlu0 %v445, 113
  %v453 = vpop.permute.xlu0 %452
  %454 = vrot.lane.b32.xlu0 %v446, 113
  %v455 = vpop.permute.xlu0 %454
  %v456 = vsel %vm175, %v451, %v453
  %v457 = vsel %vm175, %v453, %v455
  %v460 = vsel %vm46, %v456, 0.0
  %v461 = vsel %vm47, %v457, 0.0
  %462 = vst [vmem:[#allocation5 + $0x60] sm:$0xff] %v460
  %463 = vst [vmem:[#allocation5 + $0x68] sm:$0xff] %v461
  %v464 = vld [vmem:[#allocation3 + $0x8] sm:$0xff]
  %v465 = vld [vmem:[#allocation3 + $0x10] sm:$0xff]
  %v466 = vld [vmem:[#allocation3 + $0x18] sm:$0xff]
  %470 = vrot.lane.b32.xlu0 %v464, 112
  %v471 = vpop.permute.xlu0 %470
  %472 = vrot.lane.b32.xlu0 %v465, 112
  %v473 = vpop.permute.xlu0 %472
  %474 = vrot.lane.b32.xlu0 %v466, 112
  %v475 = vpop.permute.xlu0 %474
  %v476 = vsel %vm196, %v471, %v473
  %v477 = vsel %vm196, %v473, %v475
  %480 = vst [vmem:[#allocation5 + $0x70] sm:$0xff] %v476
  %481 = vst [vmem:[#allocation5 + $0x78] sm:$0xff] %v477
  %v482 = vld [vmem:[#allocation3 + $0x8] sm:$0xff]
  %v483 = vld [vmem:[#allocation3 + $0x10] sm:$0xff]
  %v484 = vld [vmem:[#allocation3 + $0x18] sm:$0xff]
  %488 = vrot.lane.b32.xlu0 %v482, 111
  %v489 = vpop.permute.xlu0 %488
  %490 = vrot.lane.b32.xlu0 %v483, 111
  %v491 = vpop.permute.xlu0 %490
  %492 = vrot.lane.b32.xlu0 %v484, 111
  %v493 = vpop.permute.xlu0 %492
  %v494 = vsel %vm215, %v489, %v491
  %v495 = vsel %vm215, %v491, %v493
  %v498 = vsel %vm97, %v494, 0.0
  %v499 = vsel %vm98, %v495, 0.0
  %500 = vst [vmem:[#allocation5 + $0x80] sm:$0xff] %v498
  %501 = vst [vmem:[#allocation5 + $0x88] sm:$0xff] %v499
  %v502 = vld [vmem:[#allocation5] sm:$0xff]
  %v503 = vld [vmem:[#allocation5 + $0x8] sm:$0xff]
  %v504 = vld [vmem:[#allocation5 + $0x10] sm:$0xff]
  %v505 = vld [vmem:[#allocation5 + $0x18] sm:$0xff]
  %v506 = vld [vmem:[#allocation5 + $0x20] sm:$0xff]
  %v507 = vld [vmem:[#allocation5 + $0x28] sm:$0xff]
  %v508 = vld [vmem:[#allocation5 + $0x30] sm:$0xff]
  %v509 = vld [vmem:[#allocation5 + $0x38] sm:$0xff]
  %v510 = vld [vmem:[#allocation5 + $0x40] sm:$0xff]
  %v511 = vld [vmem:[#allocation5 + $0x48] sm:$0xff]
  %v512 = vld [vmem:[#allocation5 + $0x50] sm:$0xff]
  %v513 = vld [vmem:[#allocation5 + $0x58] sm:$0xff]
  %v514 = vld [vmem:[#allocation5 + $0x60] sm:$0xff]
  %v515 = vld [vmem:[#allocation5 + $0x68] sm:$0xff]
  %v516 = vld [vmem:[#allocation5 + $0x70] sm:$0xff]
  %v517 = vld [vmem:[#allocation5 + $0x78] sm:$0xff]
  %v518 = vld [vmem:[#allocation5 + $0x80] sm:$0xff]
  %v519 = vld [vmem:[#allocation5 + $0x88] sm:$0xff]
  %v521 = vsel %vm242, %v27, 0
  %523 = vmatprep.subr.mxu0 %v503
  %524 = vmatpush1.msra.mxu0 %v502
  %525 = vmatprep.subr.mxu0 %v505
  %526 = vmatpush1.msra.mxu0 %v504
  %527 = vmatprep.subr.mxu0 %v507
  %528 = vmatpush1.msra.mxu0 %v506
  %529 = vmatprep.subr.mxu0 %v509
  %530 = vmatpush1.msra.mxu0 %v508
  %531 = vmatprep.subr.mxu0 %v511
  %532 = vmatpush1.msra.mxu0 %v510
  %533 = vmatprep.subr.mxu0 %v513
  %534 = vmatpush1.msra.mxu0 %v512
  %535 = vmatprep.subr.mxu0 %v515
  %536 = vmatpush1.msra.mxu0 %v514
  %537 = vmatprep.subr.mxu0 %v517
  %538 = vmatpush1.msra.mxu0 %v516
  %539 = vmatprep.subr.mxu0 %v519
  %540 = vmatpush1.msra.mxu0 %v518
  %541 = vmatprep.subr.mxu0 0.0
  %542 = vmatpush1.msra.mxu0 0.0
  %543 = vmatprep.subr.mxu0 0.0
  %544 = vmatpush1.msra.mxu0 0.0
  %545 = vmatprep.subr.mxu0 0.0
  %546 = vmatpush1.msra.mxu0 0.0
  %547 = vmatprep.subr.mxu0 0.0
  %548 = vmatpush1.msra.mxu0 0.0
  %549 = vmatprep.subr.mxu0 0.0
  %550 = vmatpush1.msra.mxu0 0.0
  %551 = vmatprep.subr.mxu0 0.0
  %552 = vmatpush1.msra.mxu0 0.0
  %553 = vmatprep.subr.mxu0 0.0
  %554 = vmatpush1.msra.mxu0 0.0
  %555 = vmatprep.subr.mxu0 0.0
  %556 = vmatpush1.msra.mxu0 0.0
  %557 = vmatprep.subr.mxu0 0.0
  %558 = vmatpush1.msra.mxu0 0.0
  %559 = vmatprep.subr.mxu0 0.0
  %560 = vmatpush1.msra.mxu0 0.0
  %561 = vmatprep.subr.mxu0 0.0
  %562 = vmatpush1.msra.mxu0 0.0
  %563 = vmatprep.subr.mxu0 0.0
  %564 = vmatpush1.msra.mxu0 0.0
  %565 = vmatprep.subr.mxu0 0.0
  %566 = vmatpush1.msra.mxu0 0.0
  %567 = vmatprep.subr.mxu0 0.0
  %568 = vmatpush1.msra.mxu0 0.0
  %569 = vmatprep.subr.mxu0 0.0
  %570 = vmatpush1.msra.mxu0 0.0
  %571 = vmatprep.subr.mxu0 0.0
  %572 = vmatpush1.msra.mxu0 0.0
  %573 = vmatprep.subr.mxu0 0.0
  %574 = vmatpush1.msra.mxu0 0.0
  %575 = vmatprep.subr.mxu0 0.0
  %576 = vmatpush1.msra.mxu0 0.0
  %577 = vmatprep.subr.mxu0 0.0
  %578 = vmatpush1.msra.mxu0 0.0
  %579 = vmatprep.subr.mxu0 0.0
  %580 = vmatpush1.msra.mxu0 0.0
  %581 = vmatprep.subr.mxu0 0.0
  %582 = vmatpush1.msra.mxu0 0.0
  %583 = vmatprep.subr.mxu0 0.0
  %584 = vmatpush1.msra.mxu0 0.0
  %585 = vmatprep.subr.mxu0 0.0
  %586 = vmatpush1.msra.mxu0 0.0
  %587 = vmatprep.mubr.f32.mxu0 0.0
  %588 = vmatmul.mubr.f32.gmra.mrb[0].mxu0 %v521
  %v589 = vpop.f32.mrb[0].mxu0
  %v590 = vadd.f32 0.0, %v589
  %v591 = vpop.f32.mrb[0].mxu0
  %v592 = vadd.f32 0.0, %v591
  %593 = vdwg.mxu0
  %v594 = vadd.f32 %v590, %v592
  %595 = vadd.xlane.f32.xlu0 %v594
  %v596 = vpop.xlane.xlu0 %595
  %v597 = vmul.f32 %v596, %v320
  %v598 = vsub.f32 %v590, %v597
  %v599 = vsub.f32 %v592, %v597
  %v600 = vmul.f32 %v598, %v598
  %v601 = vmul.f32 %v599, %v599
  %v602 = vadd.f32 %v600, %v601
  %603 = vadd.xlane.f32.xlu0 %v602
  %v604 = vpop.xlane.xlu0 %603
  %v605 = vmul.f32 %v604, %v320
  %v606 = vadd.f32 %v605, 1e-05
  %v607 = vrsqrt.pop %v606
  %v608 = vmul.f32 %v598, %v607
  %v609 = vmul.f32 %v599, %v607
  %vm610 = vcmp.ge.f32.partialorder %v608, 0.0
  %vm611 = vcmp.ge.f32.partialorder %v609, 0.0
  %v612 = vmul.f32 %v608, 0.2
  %v613 = vmul.f32 %v609, 0.2
  %v614 = vsel %vm610, %v608, %v612
  %v615 = vsel %vm611, %v609, %v613
  %616 = vst [vmem:[%s4] sm:$0xff] %v614
  %617 = vst [vmem:[%s4 + $0x8] sm:$0xff] %v615
  %s618 = scalar_lea.vmem %s0, 8
  %v619 = vld [vmem:[%s618] sm:$0xff]
  %v621 = vcombine.high %v619, %v619
  %623 = vst [vmem:[#allocation2 + $0x8] sm:$0xf] %v619
  %624 = vst [vmem:[#allocation2 + $0x10] sm:$0xf] %v621
  %v625 = vld [vmem:[#allocation2] sm:$0xff]
  %v626 = vld [vmem:[#allocation2 + $0x8] sm:$0xff]
  %v627 = vld [vmem:[#allocation2 + $0x10] sm:$0xff]
  %631 = vrot.lane.b32.xlu0 %v625, 17
  %v632 = vpop.permute.xlu0 %631
  %633 = vrot.lane.b32.xlu0 %v626, 17
  %v634 = vpop.permute.xlu0 %633
  %635 = vrot.lane.b32.xlu0 %v627, 17
  %v636 = vpop.permute.xlu0 %635
  %v637 = vsel %vm57, %v632, %v634
  %v638 = vsel %vm57, %v634, %v636
  %v641 = vsel %vm46, %v637, 0.0
  %v642 = vsel %vm47, %v638, 0.0
  %643 = vst [vmem:[#allocation4] sm:$0xff] %v641
  %644 = vst [vmem:[#allocation4 + $0x8] sm:$0xff] %v642
  %v645 = vld [vmem:[#allocation2] sm:$0xff]
  %v646 = vld [vmem:[#allocation2 + $0x8] sm:$0xff]
  %v647 = vld [vmem:[#allocation2 + $0x10] sm:$0xff]
  %651 = vrot.lane.b32.xlu0 %v645, 16
  %v652 = vpop.permute.xlu0 %651
  %653 = vrot.lane.b32.xlu0 %v646, 16
  %v654 = vpop.permute.xlu0 %653
  %655 = vrot.lane.b32.xlu0 %v647, 16
  %v656 = vpop.permute.xlu0 %655
  %v657 = vsel %vm78, %v652, %v654
  %v658 = vsel %vm78, %v654, %v656
  %661 = vst [vmem:[#allocation4 + $0x10] sm:$0xff] %v657
  %662 = vst [vmem:[#allocation4 + $0x18] sm:$0xff] %v658
  %v663 = vld [vmem:[#allocation2] sm:$0xff]
  %v664 = vld [vmem:[#allocation2 + $0x8] sm:$0xff]
  %v665 = vld [vmem:[#allocation2 + $0x10] sm:$0xff]
  %669 = vrot.lane.b32.xlu0 %v663, 15
  %v670 = vpop.permute.xlu0 %669
  %671 = vrot.lane.b32.xlu0 %v664, 15
  %v672 = vpop.permute.xlu0 %671
  %673 = vrot.lane.b32.xlu0 %v665, 15
  %v674 = vpop.permute.xlu0 %673
  %v675 = vsel %vm108, %v670, %v672
  %v676 = vsel %vm108, %v672, %v674
  %v679 = vsel %vm97, %v675, 0.0
  %v680 = vsel %vm98, %v676, 0.0
  %681 = vst [vmem:[#allocation4 + $0x20] sm:$0xff] %v679
  %682 = vst [vmem:[#allocation4 + $0x28] sm:$0xff] %v680
  %v683 = vld [vmem:[#allocation2] sm:$0xff]
  %v684 = vld [vmem:[#allocation2 + $0x8] sm:$0xff]
  %v685 = vld [vmem:[#allocation2 + $0x10] sm:$0xff]
  %689 = vrot.lane.b32.xlu0 %v683, 1
  %v690 = vpop.permute.xlu0 %689
  %691 = vrot.lane.b32.xlu0 %v684, 1
  %v692 = vpop.permute.xlu0 %691
  %693 = vrot.lane.b32.xlu0 %v685, 1
  %v694 = vpop.permute.xlu0 %693
  %v695 = vsel %vm129, %v690, %v692
  %v696 = vsel %vm129, %v692, %v694
  %v699 = vsel %vm46, %v695, 0.0
  %v700 = vsel %vm47, %v696, 0.0
  %701 = vst [vmem:[#allocation4 + $0x30] sm:$0xff] %v699
  %702 = vst [vmem:[#allocation4 + $0x38] sm:$0xff] %v700
  %v703 = vld [vmem:[#allocation2 + $0x8] sm:$0xff]
  %v704 = vld [vmem:[#allocation2 + $0x10] sm:$0xff]
  %705 = vst [vmem:[#allocation4 + $0x40] sm:$0xff] %v703
  %706 = vst [vmem:[#allocation4 + $0x48] sm:$0xff] %v704
  %v707 = vld [vmem:[#allocation2 + $0x8] sm:$0xff]
  %v708 = vld [vmem:[#allocation2 + $0x10] sm:$0xff]
  %v709 = vld [vmem:[#allocation2 + $0x18] sm:$0xff]
  %713 = vrot.lane.b32.xlu0 %v707, 127
  %v714 = vpop.permute.xlu0 %713
  %715 = vrot.lane.b32.xlu0 %v708, 127
  %v716 = vpop.permute.xlu0 %715
  %717 = vrot.lane.b32.xlu0 %v709, 127
  %v718 = vpop.permute.xlu0 %717
  %v719 = vsel %vm154, %v714, %v716
  %v720 = vsel %vm154, %v716, %v718
  %v723 = vsel %vm97, %v719, 0.0
  %v724 = vsel %vm98, %v720, 0.0
  %725 = vst [vmem:[#allocation4 + $0x50] sm:$0xff] %v723
  %726 = vst [vmem:[#allocation4 + $0x58] sm:$0xff] %v724
  %v727 = vld [vmem:[#allocation2 + $0x8] sm:$0xff]
  %v728 = vld [vmem:[#allocation2 + $0x10] sm:$0xff]
  %v729 = vld [vmem:[#allocation2 + $0x18] sm:$0xff]
  %733 = vrot.lane.b32.xlu0 %v727, 113
  %v734 = vpop.permute.xlu0 %733
  %735 = vrot.lane.b32.xlu0 %v728, 113
  %v736 = vpop.permute.xlu0 %735
  %737 = vrot.lane.b32.xlu0 %v729, 113
  %v738 = vpop.permute.xlu0 %737
  %v739 = vsel %vm175, %v734, %v736
  %v740 = vsel %vm175, %v736, %v738
  %v743 = vsel %vm46, %v739, 0.0
  %v744 = vsel %vm47, %v740, 0.0
  %745 = vst [vmem:[#allocation4 + $0x60] sm:$0xff] %v743
  %746 = vst [vmem:[#allocation4 + $0x68] sm:$0xff] %v744
  %v747 = vld [vmem:[#allocation2 + $0x8] sm:$0xff]
  %v748 = vld [vmem:[#allocation2 + $0x10] sm:$0xff]
  %v749 = vld [vmem:[#allocation2 + $0x18] sm:$0xff]
  %753 = vrot.lane.b32.xlu0 %v747, 112
  %v754 = vpop.permute.xlu0 %753
  %755 = vrot.lane.b32.xlu0 %v748, 112
  %v756 = vpop.permute.xlu0 %755
  %757 = vrot.lane.b32.xlu0 %v749, 112
  %v758 = vpop.permute.xlu0 %757
  %v759 = vsel %vm196, %v754, %v756
  %v760 = vsel %vm196, %v756, %v758
  %763 = vst [vmem:[#allocation4 + $0x70] sm:$0xff] %v759
  %764 = vst [vmem:[#allocation4 + $0x78] sm:$0xff] %v760
  %v765 = vld [vmem:[#allocation2 + $0x8] sm:$0xff]
  %v766 = vld [vmem:[#allocation2 + $0x10] sm:$0xff]
  %v767 = vld [vmem:[#allocation2 + $0x18] sm:$0xff]
  %771 = vrot.lane.b32.xlu0 %v765, 111
  %v772 = vpop.permute.xlu0 %771
  %773 = vrot.lane.b32.xlu0 %v766, 111
  %v774 = vpop.permute.xlu0 %773
  %775 = vrot.lane.b32.xlu0 %v767, 111
  %v776 = vpop.permute.xlu0 %775
  %v777 = vsel %vm215, %v772, %v774
  %v778 = vsel %vm215, %v774, %v776
  %v781 = vsel %vm97, %v777, 0.0
  %v782 = vsel %vm98, %v778, 0.0
  %783 = vst [vmem:[#allocation4 + $0x80] sm:$0xff] %v781
  %784 = vst [vmem:[#allocation4 + $0x88] sm:$0xff] %v782
  %v785 = vld [vmem:[#allocation4] sm:$0xff]
  %v786 = vld [vmem:[#allocation4 + $0x8] sm:$0xff]
  %v787 = vld [vmem:[#allocation4 + $0x10] sm:$0xff]
  %v788 = vld [vmem:[#allocation4 + $0x18] sm:$0xff]
  %v789 = vld [vmem:[#allocation4 + $0x20] sm:$0xff]
  %v790 = vld [vmem:[#allocation4 + $0x28] sm:$0xff]
  %v791 = vld [vmem:[#allocation4 + $0x30] sm:$0xff]
  %v792 = vld [vmem:[#allocation4 + $0x38] sm:$0xff]
  %v793 = vld [vmem:[#allocation4 + $0x40] sm:$0xff]
  %v794 = vld [vmem:[#allocation4 + $0x48] sm:$0xff]
  %v795 = vld [vmem:[#allocation4 + $0x50] sm:$0xff]
  %v796 = vld [vmem:[#allocation4 + $0x58] sm:$0xff]
  %v797 = vld [vmem:[#allocation4 + $0x60] sm:$0xff]
  %v798 = vld [vmem:[#allocation4 + $0x68] sm:$0xff]
  %v799 = vld [vmem:[#allocation4 + $0x70] sm:$0xff]
  %v800 = vld [vmem:[#allocation4 + $0x78] sm:$0xff]
  %v801 = vld [vmem:[#allocation4 + $0x80] sm:$0xff]
  %v802 = vld [vmem:[#allocation4 + $0x88] sm:$0xff]
  %803 = vmatprep.subr.mxu0 %v786
  %804 = vmatpush1.msra.mxu0 %v785
  %805 = vmatprep.subr.mxu0 %v788
  %806 = vmatpush1.msra.mxu0 %v787
  %807 = vmatprep.subr.mxu0 %v790
  %808 = vmatpush1.msra.mxu0 %v789
  %809 = vmatprep.subr.mxu0 %v792
  %810 = vmatpush1.msra.mxu0 %v791
  %811 = vmatprep.subr.mxu0 %v794
  %812 = vmatpush1.msra.mxu0 %v793
  %813 = vmatprep.subr.mxu0 %v796
  %814 = vmatpush1.msra.mxu0 %v795
  %815 = vmatprep.subr.mxu0 %v798
  %816 = vmatpush1.msra.mxu0 %v797
  %817 = vmatprep.subr.mxu0 %v800
  %818 = vmatpush1.msra.mxu0 %v799
  %819 = vmatprep.subr.mxu0 %v802
  %820 = vmatpush1.msra.mxu0 %v801
  %821 = vmatprep.subr.mxu0 0.0
  %822 = vmatpush1.msra.mxu0 0.0
  %823 = vmatprep.subr.mxu0 0.0
  %824 = vmatpush1.msra.mxu0 0.0
  %825 = vmatprep.subr.mxu0 0.0
  %826 = vmatpush1.msra.mxu0 0.0
  %827 = vmatprep.subr.mxu0 0.0
  %828 = vmatpush1.msra.mxu0 0.0
  %829 = vmatprep.subr.mxu0 0.0
  %830 = vmatpush1.msra.mxu0 0.0
  %831 = vmatprep.subr.mxu0 0.0
  %832 = vmatpush1.msra.mxu0 0.0
  %833 = vmatprep.subr.mxu0 0.0
  %834 = vmatpush1.msra.mxu0 0.0
  %835 = vmatprep.subr.mxu0 0.0
  %836 = vmatpush1.msra.mxu0 0.0
  %837 = vmatprep.subr.mxu0 0.0
  %838 = vmatpush1.msra.mxu0 0.0
  %839 = vmatprep.subr.mxu0 0.0
  %840 = vmatpush1.msra.mxu0 0.0
  %841 = vmatprep.subr.mxu0 0.0
  %842 = vmatpush1.msra.mxu0 0.0
  %843 = vmatprep.subr.mxu0 0.0
  %844 = vmatpush1.msra.mxu0 0.0
  %845 = vmatprep.subr.mxu0 0.0
  %846 = vmatpush1.msra.mxu0 0.0
  %847 = vmatprep.subr.mxu0 0.0
  %848 = vmatpush1.msra.mxu0 0.0
  %849 = vmatprep.subr.mxu0 0.0
  %850 = vmatpush1.msra.mxu0 0.0
  %851 = vmatprep.subr.mxu0 0.0
  %852 = vmatpush1.msra.mxu0 0.0
  %853 = vmatprep.subr.mxu0 0.0
  %854 = vmatpush1.msra.mxu0 0.0
  %855 = vmatprep.subr.mxu0 0.0
  %856 = vmatpush1.msra.mxu0 0.0
  %857 = vmatprep.subr.mxu0 0.0
  %858 = vmatpush1.msra.mxu0 0.0
  %859 = vmatprep.subr.mxu0 0.0
  %860 = vmatpush1.msra.mxu0 0.0
  %861 = vmatprep.subr.mxu0 0.0
  %862 = vmatpush1.msra.mxu0 0.0
  %863 = vmatprep.subr.mxu0 0.0
  %864 = vmatpush1.msra.mxu0 0.0
  %865 = vmatprep.subr.mxu0 0.0
  %866 = vmatpush1.msra.mxu0 0.0
  %867 = vmatprep.mubr.f32.mxu0 0.0
  %868 = vmatmul.mubr.f32.gmra.mrb[0].mxu0 %v244
  %v869 = vpop.f32.mrb[0].mxu0
  %v870 = vadd.f32 0.0, %v869
  %v871 = vpop.f32.mrb[0].mxu0
  %v872 = vadd.f32 0.0, %v871
  %873 = vdwg.mxu0
  %v874 = vadd.f32 %v870, %v872
  %875 = vadd.xlane.f32.xlu0 %v874
  %v876 = vpop.xlane.xlu0 %875
  %v877 = vmul.f32 %v876, %v320
  %v878 = vsub.f32 %v870, %v877
  %v879 = vsub.f32 %v872, %v877
  %v880 = vmul.f32 %v878, %v878
  %v881 = vmul.f32 %v879, %v879
  %v882 = vadd.f32 %v880, %v881
  %883 = vadd.xlane.f32.xlu0 %v882
  %v884 = vpop.xlane.xlu0 %883
  %v885 = vmul.f32 %v884, %v320
  %v886 = vadd.f32 %v885, 1e-05
  %v887 = vrsqrt.pop %v886
  %v888 = vmul.f32 %v878, %v887
  %v889 = vmul.f32 %v879, %v887
  %vm890 = vcmp.ge.f32.partialorder %v888, 0.0
  %vm891 = vcmp.ge.f32.partialorder %v889, 0.0
  %v892 = vmul.f32 %v888, 0.2
  %v893 = vmul.f32 %v889, 0.2
  %v894 = vsel %vm890, %v888, %v892
  %v895 = vsel %vm891, %v889, %v893
  %896 = vst [vmem:[#allocation3 + $0x8] sm:$0xff] %v894
  %897 = vst [vmem:[#allocation3 + $0x10] sm:$0xff] %v895
  %v898 = vld [vmem:[#allocation3] sm:$0xff]
  %v899 = vld [vmem:[#allocation3 + $0x8] sm:$0xff]
  %v900 = vld [vmem:[#allocation3 + $0x10] sm:$0xff]
  %904 = vrot.lane.b32.xlu0 %v898, 17
  %v905 = vpop.permute.xlu0 %904
  %906 = vrot.lane.b32.xlu0 %v899, 17
  %v907 = vpop.permute.xlu0 %906
  %908 = vrot.lane.b32.xlu0 %v900, 17
  %v909 = vpop.permute.xlu0 %908
  %v910 = vsel %vm57, %v905, %v907
  %v911 = vsel %vm57, %v907, %v909
  %v914 = vsel %vm46, %v910, 0.0
  %v915 = vsel %vm47, %v911, 0.0
  %916 = vst [vmem:[#allocation5] sm:$0xff] %v914
  %917 = vst [vmem:[#allocation5 + $0x8] sm:$0xff] %v915
  %v918 = vld [vmem:[#allocation3] sm:$0xff]
  %v919 = vld [vmem:[#allocation3 + $0x8] sm:$0xff]
  %v920 = vld [vmem:[#allocation3 + $0x10] sm:$0xff]
  %924 = vrot.lane.b32.xlu0 %v918, 16
  %v925 = vpop.permute.xlu0 %924
  %926 = vrot.lane.b32.xlu0 %v919, 16
  %v927 = vpop.permute.xlu0 %926
  %928 = vrot.lane.b32.xlu0 %v920, 16
  %v929 = vpop.permute.xlu0 %928
  %v930 = vsel %vm78, %v925, %v927
  %v931 = vsel %vm78, %v927, %v929
  %934 = vst [vmem:[#allocation5 + $0x10] sm:$0xff] %v930
  %935 = vst [vmem:[#allocation5 + $0x18] sm:$0xff] %v931
  %v936 = vld [vmem:[#allocation3] sm:$0xff]
  %v937 = vld [vmem:[#allocation3 + $0x8] sm:$0xff]
  %v938 = vld [vmem:[#allocation3 + $0x10] sm:$0xff]
  %942 = vrot.lane.b32.xlu0 %v936, 15
  %v943 = vpop.permute.xlu0 %942
  %944 = vrot.lane.b32.xlu0 %v937, 15
  %v945 = vpop.permute.xlu0 %944
  %946 = vrot.lane.b32.xlu0 %v938, 15
  %v947 = vpop.permute.xlu0 %946
  %v948 = vsel %vm108, %v943, %v945
  %v949 = vsel %vm108, %v945, %v947
  %v952 = vsel %vm97, %v948, 0.0
  %v953 = vsel %vm98, %v949, 0.0
  %954 = vst [vmem:[#allocation5 + $0x20] sm:$0xff] %v952
  %955 = vst [vmem:[#allocation5 + $0x28] sm:$0xff] %v953
  %v956 = vld [vmem:[#allocation3] sm:$0xff]
  %v957 = vld [vmem:[#allocation3 + $0x8] sm:$0xff]
  %v958 = vld [vmem:[#allocation3 + $0x10] sm:$0xff]
  %962 = vrot.lane.b32.xlu0 %v956, 1
  %v963 = vpop.permute.xlu0 %962
  %964 = vrot.lane.b32.xlu0 %v957, 1
  %v965 = vpop.permute.xlu0 %964
  %966 = vrot.lane.b32.xlu0 %v958, 1
  %v967 = vpop.permute.xlu0 %966
  %v968 = vsel %vm129, %v963, %v965
  %v969 = vsel %vm129, %v965, %v967
  %v972 = vsel %vm46, %v968, 0.0
  %v973 = vsel %vm47, %v969, 0.0
  %974 = vst [vmem:[#allocation5 + $0x30] sm:$0xff] %v972
  %975 = vst [vmem:[#allocation5 + $0x38] sm:$0xff] %v973
  %v976 = vld [vmem:[#allocation3 + $0x8] sm:$0xff]
  %v977 = vld [vmem:[#allocation3 + $0x10] sm:$0xff]
  %978 = vst [vmem:[#allocation5 + $0x40] sm:$0xff] %v976
  %979 = vst [vmem:[#allocation5 + $0x48] sm:$0xff] %v977
  %v980 = vld [vmem:[#allocation3 + $0x8] sm:$0xff]
  %v981 = vld [vmem:[#allocation3 + $0x10] sm:$0xff]
  %v982 = vld [vmem:[#allocation3 + $0x18] sm:$0xff]
  %986 = vrot.lane.b32.xlu0 %v980, 127
  %v987 = vpop.permute.xlu0 %986
  %988 = vrot.lane.b32.xlu0 %v981, 127
  %v989 = vpop.permute.xlu0 %988
  %990 = vrot.lane.b32.xlu0 %v982, 127
  %v991 = vpop.permute.xlu0 %990
  %v992 = vsel %vm154, %v987, %v989
  %v993 = vsel %vm154, %v989, %v991
  %v996 = vsel %vm97, %v992, 0.0
  %v997 = vsel %vm98, %v993, 0.0
  %998 = vst [vmem:[#allocation5 + $0x50] sm:$0xff] %v996
  %999 = vst [vmem:[#allocation5 + $0x58] sm:$0xff] %v997
  %v1000 = vld [vmem:[#allocation3 + $0x8] sm:$0xff]
  %v1001 = vld [vmem:[#allocation3 + $0x10] sm:$0xff]
  %v1002 = vld [vmem:[#allocation3 + $0x18] sm:$0xff]
  %1006 = vrot.lane.b32.xlu0 %v1000, 113
  %v1007 = vpop.permute.xlu0 %1006
  %1008 = vrot.lane.b32.xlu0 %v1001, 113
  %v1009 = vpop.permute.xlu0 %1008
  %1010 = vrot.lane.b32.xlu0 %v1002, 113
  %v1011 = vpop.permute.xlu0 %1010
  %v1012 = vsel %vm175, %v1007, %v1009
  %v1013 = vsel %vm175, %v1009, %v1011
  %v1016 = vsel %vm46, %v1012, 0.0
  %v1017 = vsel %vm47, %v1013, 0.0
  %1018 = vst [vmem:[#allocation5 + $0x60] sm:$0xff] %v1016
  %1019 = vst [vmem:[#allocation5 + $0x68] sm:$0xff] %v1017
  %v1020 = vld [vmem:[#allocation3 + $0x8] sm:$0xff]
  %v1021 = vld [vmem:[#allocation3 + $0x10] sm:$0xff]
  %v1022 = vld [vmem:[#allocation3 + $0x18] sm:$0xff]
  %1026 = vrot.lane.b32.xlu0 %v1020, 112
  %v1027 = vpop.permute.xlu0 %1026
  %1028 = vrot.lane.b32.xlu0 %v1021, 112
  %v1029 = vpop.permute.xlu0 %1028
  %1030 = vrot.lane.b32.xlu0 %v1022, 112
  %v1031 = vpop.permute.xlu0 %1030
  %v1032 = vsel %vm196, %v1027, %v1029
  %v1033 = vsel %vm196, %v1029, %v1031
  %1036 = vst [vmem:[#allocation5 + $0x70] sm:$0xff] %v1032
  %1037 = vst [vmem:[#allocation5 + $0x78] sm:$0xff] %v1033
  %v1038 = vld [vmem:[#allocation3 + $0x8] sm:$0xff]
  %v1039 = vld [vmem:[#allocation3 + $0x10] sm:$0xff]
  %v1040 = vld [vmem:[#allocation3 + $0x18] sm:$0xff]
  %1044 = vrot.lane.b32.xlu0 %v1038, 111
  %v1045 = vpop.permute.xlu0 %1044
  %1046 = vrot.lane.b32.xlu0 %v1039, 111
  %v1047 = vpop.permute.xlu0 %1046
  %1048 = vrot.lane.b32.xlu0 %v1040, 111
  %v1049 = vpop.permute.xlu0 %1048
  %v1050 = vsel %vm215, %v1045, %v1047
  %v1051 = vsel %vm215, %v1047, %v1049
  %v1054 = vsel %vm97, %v1050, 0.0
  %v1055 = vsel %vm98, %v1051, 0.0
  %1056 = vst [vmem:[#allocation5 + $0x80] sm:$0xff] %v1054
  %1057 = vst [vmem:[#allocation5 + $0x88] sm:$0xff] %v1055
  %v1058 = vld [vmem:[#allocation5] sm:$0xff]
  %v1059 = vld [vmem:[#allocation5 + $0x8] sm:$0xff]
  %v1060 = vld [vmem:[#allocation5 + $0x10] sm:$0xff]
  %v1061 = vld [vmem:[#allocation5 + $0x18] sm:$0xff]
  %v1062 = vld [vmem:[#allocation5 + $0x20] sm:$0xff]
  %v1063 = vld [vmem:[#allocation5 + $0x28] sm:$0xff]
  %v1064 = vld [vmem:[#allocation5 + $0x30] sm:$0xff]
  %v1065 = vld [vmem:[#allocation5 + $0x38] sm:$0xff]
  %v1066 = vld [vmem:[#allocation5 + $0x40] sm:$0xff]
  %v1067 = vld [vmem:[#allocation5 + $0x48] sm:$0xff]
  %v1068 = vld [vmem:[#allocation5 + $0x50] sm:$0xff]
  %v1069 = vld [vmem:[#allocation5 + $0x58] sm:$0xff]
  %v1070 = vld [vmem:[#allocation5 + $0x60] sm:$0xff]
  %v1071 = vld [vmem:[#allocation5 + $0x68] sm:$0xff]
  %v1072 = vld [vmem:[#allocation5 + $0x70] sm:$0xff]
  %v1073 = vld [vmem:[#allocation5 + $0x78] sm:$0xff]
  %v1074 = vld [vmem:[#allocation5 + $0x80] sm:$0xff]
  %v1075 = vld [vmem:[#allocation5 + $0x88] sm:$0xff]
  %1076 = vmatprep.subr.mxu0 %v1059
  %1077 = vmatpush1.msra.mxu0 %v1058
  %1078 = vmatprep.subr.mxu0 %v1061
  %1079 = vmatpush1.msra.mxu0 %v1060
  %1080 = vmatprep.subr.mxu0 %v1063
  %1081 = vmatpush1.msra.mxu0 %v1062
  %1082 = vmatprep.subr.mxu0 %v1065
  %1083 = vmatpush1.msra.mxu0 %v1064
  %1084 = vmatprep.subr.mxu0 %v1067
  %1085 = vmatpush1.msra.mxu0 %v1066
  %1086 = vmatprep.subr.mxu0 %v1069
  %1087 = vmatpush1.msra.mxu0 %v1068
  %1088 = vmatprep.subr.mxu0 %v1071
  %1089 = vmatpush1.msra.mxu0 %v1070
  %1090 = vmatprep.subr.mxu0 %v1073
  %1091 = vmatpush1.msra.mxu0 %v1072
  %1092 = vmatprep.subr.mxu0 %v1075
  %1093 = vmatpush1.msra.mxu0 %v1074
  %1094 = vmatprep.subr.mxu0 0.0
  %1095 = vmatpush1.msra.mxu0 0.0
  %1096 = vmatprep.subr.mxu0 0.0
  %1097 = vmatpush1.msra.mxu0 0.0
  %1098 = vmatprep.subr.mxu0 0.0
  %1099 = vmatpush1.msra.mxu0 0.0
  %1100 = vmatprep.subr.mxu0 0.0
  %1101 = vmatpush1.msra.mxu0 0.0
  %1102 = vmatprep.subr.mxu0 0.0
  %1103 = vmatpush1.msra.mxu0 0.0
  %1104 = vmatprep.subr.mxu0 0.0
  %1105 = vmatpush1.msra.mxu0 0.0
  %1106 = vmatprep.subr.mxu0 0.0
  %1107 = vmatpush1.msra.mxu0 0.0
  %1108 = vmatprep.subr.mxu0 0.0
  %1109 = vmatpush1.msra.mxu0 0.0
  %1110 = vmatprep.subr.mxu0 0.0
  %1111 = vmatpush1.msra.mxu0 0.0
  %1112 = vmatprep.subr.mxu0 0.0
  %1113 = vmatpush1.msra.mxu0 0.0
  %1114 = vmatprep.subr.mxu0 0.0
  %1115 = vmatpush1.msra.mxu0 0.0
  %1116 = vmatprep.subr.mxu0 0.0
  %1117 = vmatpush1.msra.mxu0 0.0
  %1118 = vmatprep.subr.mxu0 0.0
  %1119 = vmatpush1.msra.mxu0 0.0
  %1120 = vmatprep.subr.mxu0 0.0
  %1121 = vmatpush1.msra.mxu0 0.0
  %1122 = vmatprep.subr.mxu0 0.0
  %1123 = vmatpush1.msra.mxu0 0.0
  %1124 = vmatprep.subr.mxu0 0.0
  %1125 = vmatpush1.msra.mxu0 0.0
  %1126 = vmatprep.subr.mxu0 0.0
  %1127 = vmatpush1.msra.mxu0 0.0
  %1128 = vmatprep.subr.mxu0 0.0
  %1129 = vmatpush1.msra.mxu0 0.0
  %1130 = vmatprep.subr.mxu0 0.0
  %1131 = vmatpush1.msra.mxu0 0.0
  %1132 = vmatprep.subr.mxu0 0.0
  %1133 = vmatpush1.msra.mxu0 0.0
  %1134 = vmatprep.subr.mxu0 0.0
  %1135 = vmatpush1.msra.mxu0 0.0
  %1136 = vmatprep.subr.mxu0 0.0
  %1137 = vmatpush1.msra.mxu0 0.0
  %1138 = vmatprep.subr.mxu0 0.0
  %1139 = vmatpush1.msra.mxu0 0.0
  %1140 = vmatprep.mubr.f32.mxu0 0.0
  %1141 = vmatmul.mubr.f32.gmra.mrb[0].mxu0 %v521
  %v1142 = vpop.f32.mrb[0].mxu0
  %v1143 = vadd.f32 0.0, %v1142
  %v1144 = vpop.f32.mrb[0].mxu0
  %v1145 = vadd.f32 0.0, %v1144
  %1146 = vdwg.mxu0
  %v1147 = vadd.f32 %v1143, %v1145
  %1148 = vadd.xlane.f32.xlu0 %v1147
  %v1149 = vpop.xlane.xlu0 %1148
  %v1150 = vmul.f32 %v1149, %v320
  %v1151 = vsub.f32 %v1143, %v1150
  %v1152 = vsub.f32 %v1145, %v1150
  %v1153 = vmul.f32 %v1151, %v1151
  %v1154 = vmul.f32 %v1152, %v1152
  %v1155 = vadd.f32 %v1153, %v1154
  %1156 = vadd.xlane.f32.xlu0 %v1155
  %v1157 = vpop.xlane.xlu0 %1156
  %v1158 = vmul.f32 %v1157, %v320
  %v1159 = vadd.f32 %v1158, 1e-05
  %v1160 = vrsqrt.pop %v1159
  %v1161 = vmul.f32 %v1151, %v1160
  %v1162 = vmul.f32 %v1152, %v1160
  %vm1163 = vcmp.ge.f32.partialorder %v1161, 0.0
  %vm1164 = vcmp.ge.f32.partialorder %v1162, 0.0
  %v1165 = vmul.f32 %v1161, 0.2
  %v1166 = vmul.f32 %v1162, 0.2
  %v1167 = vsel %vm1163, %v1161, %v1165
  %v1168 = vsel %vm1164, %v1162, %v1166
  %s1169 = scalar_lea.vmem %s4, 16
  %1170 = vst [vmem:[%s1169] sm:$0xff] %v1167
  %1171 = vst [vmem:[%s1169 + $0x8] sm:$0xff] %v1168
  // Predicated region
  $region18: #{conv_block_forward.1} parent=0 // pred_check
    _
  $region19: #{conv_block_forward.1} parent=0 // pred_check_branch
    %1173 = sbr.rel (0) target = $region21
  $region20: #{conv_block_forward.1} parent=0 // pred_region
    _
  $region21: #{conv_block_forward.1} parent=0 // pred_fallthru
    _
  // Predicated region
  $region22: #{conv_block_forward.1} parent=0 // pred_check
    _
  $region23: #{conv_block_forward.1} parent=0 // pred_check_branch
    %1175 = sbr.rel (0) target = $region25
  $region24: #{conv_block_forward.1} parent=0 // pred_region
    _
  $region25: #{conv_block_forward.1} parent=0 // pred_fallthru
    _

</llo_original>
